<compile_context>
chip_gen: v5e
topology: v5e:2x2
jax: 0.10.0
libtpu: 0.0.40
codegen_flags: <defaults>
</compile_context>

<pallas_src>
import math

import jax
import jax.numpy as jnp
from jax.experimental import pallas as pl
from jax.experimental.pallas import tpu as pltpu


def _elu(x):
    # F.elu with default alpha=1.0
    return jnp.where(x > 0, x, jnp.exp(x) - 1.0)


def _round_up(x, m):
    return ((x + m - 1) // m) * m


def gat_kernel(f1_ref, f2_ref, adj_ref, whk_ref, o_ref, m_sc, l_sc, acc_sc):
    j = pl.program_id(1)

    # --- per-query-tile prologue (first key tile only) -----------------------
    @pl.when(j == 0)
    def _init():
        m_sc[...] = jnp.full_like(m_sc, -jnp.inf)
        l_sc[...] = jnp.zeros_like(l_sc)
        acc_sc[...] = jnp.zeros_like(acc_sc)

    # --- per (query tile, key tile) body -------------------------------------
    # Attention logits from the precomputed f1 ([TM,1]) / f2 ([1,TN]) streams.
    e = _elu(f1_ref[...] + f2_ref[...])                       # [TM, TN] f32
    masked = jnp.where(adj_ref[...] != 0, e, jnp.float32(-9e15))

    # Online softmax update (f32 statistics). Masked entries carry the same
    # -9e15 fill as the reference, so fully-masked rows reproduce its
    # uniform-weight behavior (up to node-count padding, see header note).
    m_prev = m_sc[...]
    m_new = jnp.maximum(m_prev, jnp.max(masked, axis=1, keepdims=True))
    alpha = jnp.exp(m_prev - m_new)
    p = jnp.exp(masked - m_new)
    l_sc[...] = alpha * l_sc[...] + jnp.sum(p, axis=1, keepdims=True)
    # bf16 operands on the MXU, f32 accumulation.
    acc_sc[...] = alpha * acc_sc[...] + jnp.dot(
        p.astype(whk_ref.dtype), whk_ref[...],
        preferred_element_type=jnp.float32)
    m_sc[...] = m_new

    # --- epilogue (last key tile): normalize + ELU, lane-dense store ---------
    @pl.when(j == pl.num_programs(1) - 1)
    def _final():
        inv_l = pl.reciprocal(l_sc[...], approx=True)
        o_ref[...] = _elu(acc_sc[...] * inv_l)


def gat_forward(h, adj, W, a):
    """h: [N, Fin], adj: [N, N] (any numeric), W: [Fin, Fout], a: [2*Fout, 1]."""
    N, _ = h.shape
    fout = W.shape[1]
    fp = _round_up(fout, 128)              # lane-dense output feature dim

    # Tile selection: tm=128 (or 64 for tiny graphs so the "parallel" query
    # axis still has >=2 tiles for v7x's two TensorCores); key tile up to 512.
    tm = 128 if N > 128 else 64
    tn = min(512, _round_up(N, 128))
    n_p = _round_up(N, math.lcm(tm, tn))   # padded node count

    h = h.astype(jnp.float32)
    W = W.astype(jnp.float32)
    a = a.astype(jnp.float32)

    # ---- one-time precompute in XLA (tiny matmuls, done once) ---------------
    wh = h @ W                                       # [N, Fout] f32
    f1 = wh @ a[:fout, :]                            # [N, 1]
    f2 = (wh @ a[fout:, :]).T                        # [1, N]

    # ---- padding (zero rows/cols cannot change the sliced result for rows
    # that have at least one real neighbor) -----------------------------------
    wh_p = jnp.zeros((n_p, fp), jnp.bfloat16).at[:N, :fout].set(
        wh.astype(jnp.bfloat16))                     # bf16 key-side stream
    f1_p = jnp.zeros((n_p, 1), jnp.float32).at[:N, :].set(f1)
    f2_p = jnp.zeros((1, n_p), jnp.float32).at[:, :N].set(f2)

    adj_mask = (adj > 0).astype(jnp.int8)            # '>0' matches reference
    adj_p = jnp.zeros((n_p, n_p), jnp.int8).at[:N, :N].set(adj_mask)

    gi, gj = n_p // tm, n_p // tn
    grid = (gi, gj)

    cost = pl.CostEstimate(
        flops=int(2 * n_p * n_p * fp                 # attention @ Wh
                  + 6 * n_p * n_p),                  # logits / softmax elementwise
        transcendentals=int(2 * n_p * n_p),          # ELU exp + softmax exp
        bytes_accessed=int(n_p * n_p                 # int8 adjacency
                           + gi * n_p * fp * 2       # bf16 Wh_key re-read per i
                           + (gi + gj) * n_p * 4     # f1 / f2 streams
                           + n_p * fp * 4),          # output
    )

    out = pl.pallas_call(
        gat_kernel,
        out_shape=jax.ShapeDtypeStruct((n_p, fp), jnp.float32),
        grid_spec=pltpu.PrefetchScalarGridSpec(
            num_scalar_prefetch=0,
            grid=grid,
            in_specs=[
                pl.BlockSpec((tm, 1), lambda i, j: (i, 0)),    # f1 column
                pl.BlockSpec((1, tn), lambda i, j: (0, j)),    # f2 row
                pl.BlockSpec((tm, tn), lambda i, j: (i, j)),   # adj tile (int8)
                pl.BlockSpec((tn, fp), lambda i, j: (j, 0)),   # Wh key tile (bf16)
            ],
            out_specs=pl.BlockSpec((tm, fp), lambda i, j: (i, 0)),
            scratch_shapes=[
                pltpu.VMEM((tm, 1), jnp.float32),    # running max
                pltpu.VMEM((tm, 1), jnp.float32),    # running sum
                pltpu.VMEM((tm, fp), jnp.float32),   # output accumulator
            ],
        ),
        compiler_params=pltpu.CompilerParams(
            dimension_semantics=("parallel", "arbitrary"),
        ),
        cost_estimate=cost,
    )(f1_p, f2_p, adj_p, wh_p)

    return out[:N, :fout]


def _xavier_uniform(key, shape):
    fan_in, fan_out = shape[0], shape[1]
    bound = (6.0 / (fan_in + fan_out)) ** 0.5
    return jax.random.uniform(key, shape, jnp.float32, minval=-bound, maxval=bound)


def _reference(h, adj, W, a):
    """Pure-JAX mirror of the PyTorch forward for verification."""
    fout = W.shape[1]
    wh = h @ W
    f1 = wh @ a[:fout]                 # [N, 1]
    f2 = wh @ a[fout:]                 # [N, 1]
    e = jax.nn.elu(f1 + f2.T)
    att = jnp.where(adj > 0, e, -9e15)
    att = jax.nn.softmax(att, axis=1)
    return jax.nn.elu(att @ wh)


if __name__ == "__main__":
    N, in_features, out_features = 256, 16, 32

    key = jax.random.PRNGKey(0)
    k_h, k_adj, k_w, k_a = jax.random.split(key, 4)

    # Deterministic parameter init (xavier_uniform, gain=1.0), matching shapes
    # from the module's __init__.
    W = _xavier_uniform(k_w, (in_features, out_features))
    a = _xavier_uniform(k_a, (2 * out_features, 1))

    # Inputs: node features + a sparse random adjacency with self-loops.
    h = jax.random.normal(k_h, (N, in_features), jnp.float32)
    adj = (jax.random.uniform(k_adj, (N, N)) > 0.9).astype(jnp.float32)
    adj = adj + jnp.eye(N, dtype=jnp.float32)  # ensure every row has a neighbor

    out = jax.block_until_ready(gat_forward(h, adj, W, a))

    ref = _reference(h, adj, W, a)
    assert out.shape == (N, out_features)
    assert jnp.allclose(out, ref, rtol=2e-2, atol=2e-2), "mismatch vs reference"

    print("KERNEL_OK")
</pallas_src>

<mosaic_0001>
module attributes {stable_mosaic.version = 11 : i64} {
  func.func @gat_kernel(%arg0: i32, %arg1: i32, %arg2: memref<128x1xf32, #tpu.memory_space<vmem>>, %arg3: memref<1x256xf32, #tpu.memory_space<vmem>>, %arg4: memref<128x256xi8, #tpu.memory_space<vmem>>, %arg5: memref<256x128xbf16, #tpu.memory_space<vmem>>, %arg6: memref<128x128xf32, #tpu.memory_space<vmem>>, %arg7: memref<128x1xf32, #tpu.memory_space<vmem>>, %arg8: memref<128x1xf32, #tpu.memory_space<vmem>>, %arg9: memref<128x128xf32, #tpu.memory_space<vmem>>) attributes {dimension_semantics = [#tpu.dimension_semantics<parallel>, #tpu.dimension_semantics<arbitrary>], iteration_bounds = array<i64: 2, 1>, scalar_prefetch = 0 : i64, scratch_operands = 3 : i64, tpu.core_type = #tpu.core_type<tc>, window_params = [{transform_indices = @transform_0, window_bounds = array<i64: 128, 1>}, {transform_indices = @transform_1, window_bounds = array<i64: 1, 256>}, {transform_indices = @transform_2, window_bounds = array<i64: 128, 256>}, {transform_indices = @transform_3, window_bounds = array<i64: 256, 128>}, {transform_indices = @transform_4, window_bounds = array<i64: 128, 128>}]} {
    %c0_i32 = arith.constant 0 : i32
    %0 = arith.cmpi eq, %arg1, %c0_i32 : i32
    %1 = arith.extui %0 : i1 to i32
    %c0_i32_0 = arith.constant 0 : i32
    %2 = arith.cmpi ne, %1, %c0_i32_0 : i32
    scf.if %2 {
      %cst_27 = arith.constant 0xFF800000 : f32
      %46 = vector.broadcast %cst_27 : f32 to vector<128x1xf32>
      %c0_28 = arith.constant 0 : index
      %c0_29 = arith.constant 0 : index
      %47 = vector.load %arg7[%c0_28, %c0_29] : memref<128x1xf32, #tpu.memory_space<vmem>>, vector<128x1xf32>
      tpu.vector_store %arg7[%c0_28, %c0_29], %46 {strides = array<i32>} : memref<128x1xf32, #tpu.memory_space<vmem>>, vector<128x1xf32>,
      %cst_30 = arith.constant 0.000000e+00 : f32
      %48 = vector.broadcast %cst_30 : f32 to vector<128x1xf32>
      %c0_31 = arith.constant 0 : index
      %c0_32 = arith.constant 0 : index
      %49 = vector.load %arg8[%c0_31, %c0_32] : memref<128x1xf32, #tpu.memory_space<vmem>>, vector<128x1xf32>
      tpu.vector_store %arg8[%c0_31, %c0_32], %48 {strides = array<i32>} : memref<128x1xf32, #tpu.memory_space<vmem>>, vector<128x1xf32>,
      %cst_33 = arith.constant 0.000000e+00 : f32
      %50 = vector.broadcast %cst_33 : f32 to vector<128x128xf32>
      %c0_34 = arith.constant 0 : index
      %c0_35 = arith.constant 0 : index
      %51 = vector.load %arg9[%c0_34, %c0_35] : memref<128x128xf32, #tpu.memory_space<vmem>>, vector<128x128xf32>
      tpu.vector_store %arg9[%c0_34, %c0_35], %50 {strides = array<i32>} : memref<128x128xf32, #tpu.memory_space<vmem>>, vector<128x128xf32>,
    } else {
    }
    %c0 = arith.constant 0 : index
    %c0_1 = arith.constant 0 : index
    %3 = vector.load %arg2[%c0, %c0_1] : memref<128x1xf32, #tpu.memory_space<vmem>>, vector<128x1xf32>
    %c0_2 = arith.constant 0 : index
    %c0_3 = arith.constant 0 : index
    %4 = vector.load %arg3[%c0_2, %c0_3] : memref<1x256xf32, #tpu.memory_space<vmem>>, vector<1x256xf32>
    %5 = vector.broadcast %3 : vector<128x1xf32> to vector<128x256xf32>
    %6 = vector.broadcast %4 : vector<1x256xf32> to vector<128x256xf32>
    %7 = arith.addf %5, %6 : vector<128x256xf32>
    %cst = arith.constant 0.000000e+00 : f32
    %8 = vector.broadcast %cst : f32 to vector<128x256xf32>
    %9 = arith.cmpf ogt, %7, %8 : vector<128x256xf32>
    %10 = math.exp %7 : vector<128x256xf32>
    %cst_4 = arith.constant 1.000000e+00 : f32
    %11 = vector.broadcast %cst_4 : f32 to vector<128x256xf32>
    %12 = arith.subf %10, %11 : vector<128x256xf32>
    %13 = arith.select %9, %7, %12 : vector<128x256xi1>, vector<128x256xf32>
    %c0_5 = arith.constant 0 : index
    %c0_6 = arith.constant 0 : index
    %14 = vector.load %arg4[%c0_5, %c0_6] : memref<128x256xi8, #tpu.memory_space<vmem>>, vector<128x256xi8>
    %c0_i8 = arith.constant 0 : i8
    %15 = vector.broadcast %c0_i8 : i8 to vector<128x256xi8>
    %16 = arith.cmpi ne, %14, %15 : vector<128x256xi8>
    %cst_7 = arith.constant -9.000000e+15 : f32
    %17 = vector.broadcast %cst_7 : f32 to vector<128x256xf32>
    %18 = arith.select %16, %13, %17 : vector<128x256xi1>, vector<128x256xf32>
    %c0_8 = arith.constant 0 : index
    %c0_9 = arith.constant 0 : index
    %19 = vector.load %arg7[%c0_8, %c0_9] : memref<128x1xf32, #tpu.memory_space<vmem>>, vector<128x1xf32>
    %cst_10 = arith.constant dense<0xFF800000> : vector<128xf32>
    %20 = vector.multi_reduction <maximumf>, %18, %cst_10 [1] : vector<128x256xf32> to vector<128xf32>
    %21 = vector.shape_cast %20 : vector<128xf32> to vector<128x1xf32>
    %22 = arith.maximumf %19, %21 : vector<128x1xf32>
    %23 = arith.subf %19, %22 : vector<128x1xf32>
    %24 = math.exp %23 : vector<128x1xf32>
    %25 = vector.broadcast %22 : vector<128x1xf32> to vector<128x256xf32>
    %26 = arith.subf %18, %25 : vector<128x256xf32>
    %27 = math.exp %26 : vector<128x256xf32>
    %c0_11 = arith.constant 0 : index
    %c0_12 = arith.constant 0 : index
    %28 = vector.load %arg8[%c0_11, %c0_12] : memref<128x1xf32, #tpu.memory_space<vmem>>, vector<128x1xf32>
    %29 = arith.mulf %24, %28 : vector<128x1xf32>
    %cst_13 = arith.constant dense<0.000000e+00> : vector<128xf32>
    %30 = vector.multi_reduction <add>, %27, %cst_13 [1] : vector<128x256xf32> to vector<128xf32>
    %31 = vector.shape_cast %30 : vector<128xf32> to vector<128x1xf32>
    %32 = arith.addf %29, %31 : vector<128x1xf32>
    %c0_14 = arith.constant 0 : index
    %c0_15 = arith.constant 0 : index
    %33 = vector.load %arg8[%c0_14, %c0_15] : memref<128x1xf32, #tpu.memory_space<vmem>>, vector<128x1xf32>
    tpu.vector_store %arg8[%c0_14, %c0_15], %32 {strides = array<i32>} : memref<128x1xf32, #tpu.memory_space<vmem>>, vector<128x1xf32>,
    %c0_16 = arith.constant 0 : index
    %c0_17 = arith.constant 0 : index
    %34 = vector.load %arg9[%c0_16, %c0_17] : memref<128x128xf32, #tpu.memory_space<vmem>>, vector<128x128xf32>
    %35 = vector.broadcast %24 : vector<128x1xf32> to vector<128x128xf32>
    %36 = arith.mulf %35, %34 : vector<128x128xf32>
    %37 = arith.truncf %27 : vector<128x256xf32> to vector<128x256xbf16>
    %c0_18 = arith.constant 0 : index
    %c0_19 = arith.constant 0 : index
    %38 = vector.load %arg5[%c0_18, %c0_19] : memref<256x128xbf16, #tpu.memory_space<vmem>>, vector<256x128xbf16>
    %cst_20 = arith.constant dense<0.000000e+00> : vector<128x128xf32>
    %39 = tpu.matmul %37, %38, %cst_20 {dimension_numbers = #tpu.dot_dimension_numbers<[1], [0], [0], [1], [0, 0, 1, 1], [], []>} : vector<128x256xbf16>, vector<256x128xbf16>, vector<128x128xf32> -> vector<128x128xf32>
    %40 = arith.addf %36, %39 : vector<128x128xf32>
    %c0_21 = arith.constant 0 : index
    %c0_22 = arith.constant 0 : index
    %41 = vector.load %arg9[%c0_21, %c0_22] : memref<128x128xf32, #tpu.memory_space<vmem>>, vector<128x128xf32>
    tpu.vector_store %arg9[%c0_21, %c0_22], %40 {strides = array<i32>} : memref<128x128xf32, #tpu.memory_space<vmem>>, vector<128x128xf32>,
    %c0_23 = arith.constant 0 : index
    %c0_24 = arith.constant 0 : index
    %42 = vector.load %arg7[%c0_23, %c0_24] : memref<128x1xf32, #tpu.memory_space<vmem>>, vector<128x1xf32>
    tpu.vector_store %arg7[%c0_23, %c0_24], %22 {strides = array<i32>} : memref<128x1xf32, #tpu.memory_space<vmem>>, vector<128x1xf32>,
    %c0_i32_25 = arith.constant 0 : i32
    %43 = arith.cmpi eq, %arg1, %c0_i32_25 : i32
    %44 = arith.extui %43 : i1 to i32
    %c0_i32_26 = arith.constant 0 : i32
    %45 = arith.cmpi ne, %44, %c0_i32_26 : i32
    scf.if %45 {
      %c0_27 = arith.constant 0 : index
      %c0_28 = arith.constant 0 : index
      %46 = vector.load %arg8[%c0_27, %c0_28] : memref<128x1xf32, #tpu.memory_space<vmem>>, vector<128x1xf32>
      %47 = tpu.reciprocal %46 {approx = true} : vector<128x1xf32> -> vector<128x1xf32>
      %c0_29 = arith.constant 0 : index
      %c0_30 = arith.constant 0 : index
      %48 = vector.load %arg9[%c0_29, %c0_30] : memref<128x128xf32, #tpu.memory_space<vmem>>, vector<128x128xf32>
      %49 = vector.broadcast %47 : vector<128x1xf32> to vector<128x128xf32>
      %50 = arith.mulf %48, %49 : vector<128x128xf32>
      %cst_31 = arith.constant 0.000000e+00 : f32
      %51 = vector.broadcast %cst_31 : f32 to vector<128x128xf32>
      %52 = arith.cmpf ogt, %50, %51 : vector<128x128xf32>
      %53 = math.exp %50 : vector<128x128xf32>
      %cst_32 = arith.constant 1.000000e+00 : f32
      %54 = vector.broadcast %cst_32 : f32 to vector<128x128xf32>
      %55 = arith.subf %53, %54 : vector<128x128xf32>
      %56 = arith.select %52, %50, %55 : vector<128x128xi1>, vector<128x128xf32>
      %c0_33 = arith.constant 0 : index
      %c0_34 = arith.constant 0 : index
      %57 = vector.load %arg6[%c0_33, %c0_34] : memref<128x128xf32, #tpu.memory_space<vmem>>, vector<128x128xf32>
      tpu.vector_store %arg6[%c0_33, %c0_34], %56 {strides = array<i32>} : memref<128x128xf32, #tpu.memory_space<vmem>>, vector<128x128xf32>,
    } else {
    }
    return
  }
  func.func @transform_0(%arg0: i32, %arg1: i32) -> (i32, i32) {
    %c0_i32 = arith.constant 0 : i32
    %c0_i32_0 = arith.constant 0 : i32
    return %arg0, %c0_i32 : i32, i32
  }
  func.func @transform_1(%arg0: i32, %arg1: i32) -> (i32, i32) {
    %c0_i32 = arith.constant 0 : i32
    %c0_i32_0 = arith.constant 0 : i32
    return %c0_i32, %arg1 : i32, i32
  }
  func.func @transform_2(%arg0: i32, %arg1: i32) -> (i32, i32) {
    %c0_i32 = arith.constant 0 : i32
    return %arg0, %arg1 : i32, i32
  }
  func.func @transform_3(%arg0: i32, %arg1: i32) -> (i32, i32) {
    %c0_i32 = arith.constant 0 : i32
    %c0_i32_0 = arith.constant 0 : i32
    return %arg1, %c0_i32 : i32, i32
  }
  func.func @transform_4(%arg0: i32, %arg1: i32) -> (i32, i32) {
    %c0_i32 = arith.constant 0 : i32
    %c0_i32_0 = arith.constant 0 : i32
    return %arg0, %c0_i32 : i32, i32
  }
}

</mosaic_0001>

<llo_original>
// kernel: tpu_custom_call.1
$region0: #{tpu_custom_call.1}
  #allocation0 [shape = 'u32[]', space=smem, size = 0x4, offset = 0x4, fixed_abs, tag = 'smem constant byte address 0x4 - core index']
  #allocation1 [shape = 'u32[72,128]{1,0:T(1,128)}', space=vmem, size = 0x9000, scoped, tag = 'internal scratch']
  #allocation2 [shape = 'f32[128,1]{1,0:T(8,128)}', space=vmem, size = 0x10000, scoped, tag = 'scratch operand']
  #allocation3 [shape = 'f32[128,1]{1,0:T(8,128)}', space=vmem, size = 0x10000, scoped, tag = 'scratch operand']
  #allocation4 [shape = 'f32[128,128]{1,0:T(8,128)}', space=vmem, size = 0x10000, scoped, tag = 'scratch operand']
  %s0 = inlined_call_operand.vmem [shape: f32[256,1], index: 0, kind: input, shape index: {}]
  %s1 = inlined_call_operand.vmem [shape: f32[1,256], index: 1, kind: input, shape index: {}]
  %s2 = inlined_call_operand.vmem [shape: s8[256,256], index: 2, kind: input, shape index: {}]
  %s3 = inlined_call_operand.vmem [shape: bf16[256,128], index: 3, kind: input, shape index: {}]
  %s4 = inlined_call_operand.hbm [shape: f32[256,128], index: 4, kind: output, shape index: {}]
  %s5 = sld [smem:[#allocation0]]
  $region57: #{tpu_custom_call.1} parent=0
    _
  %s7 = ssub.s32 1, %s5
  %s8 = scalar_select 0, %s7, %s5
  $region1: #{tpu_custom_call.1} parent=0
    #allocation5 [shape = 'u8[131072]{0}', space=vmem, size = 0x20000, scoped, tag = 'output window, operand 0']
    #allocation6 [shape = 's32[2]{0}', space=sflag, size = 0x8, scoped, tag = 'scoped memory for tpu_custom_call.1']
    %9 = vsyncpa [#allocation6], 0
    %s10 = scalar_lea.sflag [#allocation6], 1
    %11 = vsyncpa %s10, 0
    loop: start=0, step=1, limit=4
    $region2: #{tpu_custom_call.1} parent=1 // loop_pre_header
      _
    $region3: #{tpu_custom_call.1} parent=1 // loop_header
      %s13 = sphi 0, %s17
      %p14 = scmp.ge.s32.totalorder %s13, 4
      %s20 = sphi 0, %s32
      %s21 = sphi 0, %s28
      %s22 = sphi 0, %s20
      %s23 = sphi 0, %s21
      %s24 = sphi 0, %s22
      %s25 = sphi 0, %s23
      %s35 = sphi 0, %s37
      %s38 = sphi 0, %s35
      %s39 = sphi 0, %s38
      %s55 = sphi 0, %s39
      %s61 = sphi 0, %s63
      %s64 = sphi 0, %s61
      %s65 = sphi 0, %s64
      %s81 = sphi 0, %s65
      %s89 = sphi 0, %s91
      %s92 = sphi 0, %s89
      %s93 = sphi 0, %s92
      %s109 = sphi 0, %s93
      %s115 = sphi 0, %s117
      %s118 = sphi 0, %s115
      %s119 = sphi 0, %s118
      %s135 = sphi 0, %s119
      %s141 = sphi 0, %s143
      %s144 = sphi 0, %s141
      %s145 = sphi 0, %s144
      %s161 = sphi 0, %s145
    $region4: #{tpu_custom_call.1} parent=1 // loop_header_branch
      %16 = sbr.rel (%p14) target = $region8
    $region5: #{tpu_custom_call.1} parent=1 // loop_body
      %s18 = ssub.s32 %s13, 1
      %s19 = ssub.s32 %s13, 2
      %s26 = sadd.s32 1, %s21
      %p27 = scmp.ge.s32.totalorder %s26, 1
      %s28 = scalar_select %p27, 0, %s26
      %s29 = sadd.s32 1, %s20
      %s30 = scalar_select %p27, %s29, %s20
      %p31 = scmp.ge.s32.totalorder %s30, 2
      %s32 = scalar_select %p31, 0, %s30
      %s33 = ssub.s32 %s20, %s32
      %p34 = scmp.eq.s32.totalorder %s33, 0
      %s36 = sadd.s32 %s35, 1
      %s37 = scalar_select %p34, %s35, %s36
      %p40 = pneg %p34
      %p41 = scmp.eq.s32.totalorder %s13, 1
      %p42 = por %p40, %p41
      %p43 = scmp.ne.s32.totalorder %s35, %s38
      %p44 = scmp.eq.s32.totalorder %s13, 0
      %p45 = por %p43, %p44
      %p46 = scmp.ne.s32.totalorder %s35, %s38
      %p47 = scmp.eq.s32.totalorder %s18, 1
      %p48 = por %p46, %p47
      %p49 = scmp.ne.s32.totalorder %s38, %s39
      %p50 = scmp.eq.s32.totalorder %s18, 0
      %p51 = por %p49, %p50
      %p52 = scmp.ne.s32.totalorder %s38, %s39
      %p53 = scmp.eq.s32.totalorder %s19, 1
      %p54 = por %p52, %p53
      %p56 = scmp.ne.s32.totalorder %s39, %s55
      %p57 = scmp.eq.s32.totalorder %s19, 0
      %p58 = por %p56, %p57
      %s59 = ssub.s32 %s21, %s28
      %p60 = scmp.eq.s32.totalorder %s59, 0
      %s62 = sadd.s32 %s61, 1
      %s63 = scalar_select %p60, %s61, %s62
      %p66 = pneg %p60
      %p67 = scmp.eq.s32.totalorder %s13, 1
      %p68 = por %p66, %p67
      %p69 = scmp.ne.s32.totalorder %s61, %s64
      %p70 = scmp.eq.s32.totalorder %s13, 0
      %p71 = por %p69, %p70
      %p72 = scmp.ne.s32.totalorder %s61, %s64
      %p73 = scmp.eq.s32.totalorder %s18, 1
      %p74 = por %p72, %p73
      %p75 = scmp.ne.s32.totalorder %s64, %s65
      %p76 = scmp.eq.s32.totalorder %s18, 0
      %p77 = por %p75, %p76
      %p78 = scmp.ne.s32.totalorder %s64, %s65
      %p79 = scmp.eq.s32.totalorder %s19, 1
      %p80 = por %p78, %p79
      %p82 = scmp.ne.s32.totalorder %s65, %s81
      %p83 = scmp.eq.s32.totalorder %s19, 0
      %p84 = por %p82, %p83
      %s85 = ssub.s32 %s20, %s32
      %s86 = ssub.s32 %s21, %s28
      %s87 = sor.u32 %s85, %s86
      %p88 = scmp.eq.s32.totalorder %s87, 0
      %s90 = sadd.s32 %s89, 1
      %s91 = scalar_select %p88, %s89, %s90
      %p94 = pneg %p88
      %p95 = scmp.eq.s32.totalorder %s13, 1
      %p96 = por %p94, %p95
      %p97 = scmp.ne.s32.totalorder %s89, %s92
      %p98 = scmp.eq.s32.totalorder %s13, 0
      %p99 = por %p97, %p98
      %p100 = scmp.ne.s32.totalorder %s89, %s92
      %p101 = scmp.eq.s32.totalorder %s18, 1
      %p102 = por %p100, %p101
      %p103 = scmp.ne.s32.totalorder %s92, %s93
      %p104 = scmp.eq.s32.totalorder %s18, 0
      %p105 = por %p103, %p104
      %p106 = scmp.ne.s32.totalorder %s92, %s93
      %p107 = scmp.eq.s32.totalorder %s19, 1
      %p108 = por %p106, %p107
      %p110 = scmp.ne.s32.totalorder %s93, %s109
      %p111 = scmp.eq.s32.totalorder %s19, 0
      %p112 = por %p110, %p111
      %s113 = ssub.s32 %s21, %s28
      %p114 = scmp.eq.s32.totalorder %s113, 0
      %s116 = sadd.s32 %s115, 1
      %s117 = scalar_select %p114, %s115, %s116
      %p120 = pneg %p114
      %p121 = scmp.eq.s32.totalorder %s13, 1
      %p122 = por %p120, %p121
      %p123 = scmp.ne.s32.totalorder %s115, %s118
      %p124 = scmp.eq.s32.totalorder %s13, 0
      %p125 = por %p123, %p124
      %p126 = scmp.ne.s32.totalorder %s115, %s118
      %p127 = scmp.eq.s32.totalorder %s18, 1
      %p128 = por %p126, %p127
      %p129 = scmp.ne.s32.totalorder %s118, %s119
      %p130 = scmp.eq.s32.totalorder %s18, 0
      %p131 = por %p129, %p130
      %p132 = scmp.ne.s32.totalorder %s118, %s119
      %p133 = scmp.eq.s32.totalorder %s19, 1
      %p134 = por %p132, %p133
      %p136 = scmp.ne.s32.totalorder %s119, %s135
      %p137 = scmp.eq.s32.totalorder %s19, 0
      %p138 = por %p136, %p137
      %s139 = ssub.s32 %s20, %s32
      %p140 = scmp.eq.s32.totalorder %s139, 0
      %s142 = sadd.s32 %s141, 1
      %s143 = scalar_select %p140, %s141, %s142
      %p146 = pneg %p140
      %p147 = scmp.eq.s32.totalorder %s13, 1
      %p148 = por %p146, %p147
      %p149 = scmp.ne.s32.totalorder %s141, %s144
      %p150 = scmp.eq.s32.totalorder %s13, 0
      %p151 = por %p149, %p150
      %p152 = scmp.ne.s32.totalorder %s141, %s144
      %p153 = scmp.eq.s32.totalorder %s18, 1
      %p154 = por %p152, %p153
      %p155 = scmp.ne.s32.totalorder %s144, %s145
      %p156 = scmp.eq.s32.totalorder %s18, 0
      %p157 = por %p155, %p156
      %p158 = scmp.ne.s32.totalorder %s144, %s145
      %p159 = scmp.eq.s32.totalorder %s19, 1
      %p160 = por %p158, %p159
      %p162 = scmp.ne.s32.totalorder %s145, %s161
      %p163 = scmp.eq.s32.totalorder %s19, 0
      %p164 = por %p162, %p163
      %p165 = scmp.le.s32.totalorder 1, %s13
      %p166 = scmp.lt.s32.totalorder %s13, 3
      %p167 = pnand %p165, %p166
      %p168 = pneg %p167
      // Predicated region
      $region9: #{tpu_custom_call.1} parent=5 // pred_check
        _
      $region10: #{tpu_custom_call.1} parent=5 // pred_check_branch
        %170 = sbr.rel (%p167) target = $region12
      $region11: #{tpu_custom_call.1} parent=5 // pred_region
        %s171 = ssub.s32 %s13, 1
        // Predicated region
        $region13: #{tpu_custom_call.1} parent=11 // pred_check
          %p172 = pneg %p77
        $region14: #{tpu_custom_call.1} parent=11 // pred_check_branch
          %174 = sbr.rel (%p172) target = $region16
        $region15: #{tpu_custom_call.1} parent=11 // pred_region
          %s175 = smul.u32 2, %s23
          %p176 = scmp.lt.s32.totalorder %s175, 1
          %s177 = scalar_select %p176, %s175, 1
          %s178 = scalar_lea.vmem %s1, %s177
          %s179 = smul.u32 2, %s23
        $region16: #{tpu_custom_call.1} parent=11 // pred_fallthru
          _
        // Predicated region
        $region17: #{tpu_custom_call.1} parent=11 // pred_check
          %p180 = pneg %p131
        $region18: #{tpu_custom_call.1} parent=11 // pred_check_branch
          %182 = sbr.rel (%p180) target = $region20
        $region19: #{tpu_custom_call.1} parent=11 // pred_region
          %s183 = smul.u32 32, %s23
          %p184 = scmp.lt.s32.totalorder %s183, 31
          %s185 = scalar_select %p184, %s183, 31
          %s186 = smul.addr %s185, 4
          %s187 = scalar_lea.vmem %s3, %s186
          %s188 = smul.u32 32, %s23
        $region20: #{tpu_custom_call.1} parent=11 // pred_fallthru
          _
      $region12: #{tpu_custom_call.1} parent=5 // pred_fallthru
        _
      %p189 = scmp.lt.s32.totalorder %s13, 2
      // Predicated region
      $region21: #{tpu_custom_call.1} parent=5 // pred_check
        %p190 = pneg %p189
      $region22: #{tpu_custom_call.1} parent=5 // pred_check_branch
        %192 = sbr.rel (%p190) target = $region24
      $region23: #{tpu_custom_call.1} parent=5 // pred_region
        // Predicated region
        $region25: #{tpu_custom_call.1} parent=23 // pred_check
          %p193 = pneg %p45
        $region26: #{tpu_custom_call.1} parent=23 // pred_check_branch
          %195 = sbr.rel (%p193) target = $region28
        $region27: #{tpu_custom_call.1} parent=23 // pred_region
          %s196 = smul.u32 16, %s20
          %p197 = scmp.lt.s32.totalorder %s196, 31
          %s198 = scalar_select %p197, %s196, 31
          %s199 = smul.addr %s198, 8
          %s200 = scalar_lea.vmem %s0, %s199
          %s201 = smul.u32 16, %s20
        $region28: #{tpu_custom_call.1} parent=23 // pred_fallthru
          _
        // Predicated region
        $region29: #{tpu_custom_call.1} parent=23 // pred_check
          %p202 = pneg %p99
        $region30: #{tpu_custom_call.1} parent=23 // pred_check_branch
          %204 = sbr.rel (%p202) target = $region32
        $region31: #{tpu_custom_call.1} parent=23 // pred_region
          %s205 = smul.u32 4, %s20
          %s206 = smul.u32 2, %s21
          %p207 = scmp.lt.s32.totalorder %s205, 7
          %s208 = scalar_select %p207, %s205, 7
          %p209 = scmp.lt.s32.totalorder %s206, 1
          %s210 = scalar_select %p209, %s206, 1
          %s211 = smul.addr %s208, 2
          %s212 = sadd.s32 %s210, %s211
          %s213 = smul.addr %s212, 8
          %s214 = scalar_lea.vmem %s2, %s213
          %s215 = smul.u32 4, %s20
          %s216 = smul.u32 2, %s21
        $region32: #{tpu_custom_call.1} parent=23 // pred_fallthru
          _
      $region24: #{tpu_custom_call.1} parent=5 // pred_fallthru
        _
      %p217 = scmp.le.s32.totalorder 1, %s13
      %p218 = scmp.lt.s32.totalorder %s13, 3
      %p219 = pnand %p217, %p218
      %p220 = pneg %p219
      // Predicated region
      $region33: #{tpu_custom_call.1} parent=5 // pred_check
        _
      $region34: #{tpu_custom_call.1} parent=5 // pred_check_branch
        %222 = sbr.rel (%p219) target = $region36
      $region35: #{tpu_custom_call.1} parent=5 // pred_region
        %s223 = ssub.s32 %s13, 1
        %s224 = smul.u32 16, %s22
        %p225 = scmp.lt.s32.totalorder %s224, 31
        %s226 = scalar_select %p225, %s224, 31
        %s227 = smul.addr %s226, 8
        %s228 = scalar_lea.vmem %s0, %s227
        %p229 = pneg %p51
        %p230 = pneg %p48
        %s231 = smul.u32 2, %s23
        %p232 = scmp.lt.s32.totalorder %s231, 1
        %s233 = scalar_select %p232, %s231, 1
        %s234 = scalar_lea.vmem %s1, %s233
        %p235 = pneg %p77
        %p236 = pneg %p74
        %s237 = smul.u32 4, %s22
        %s238 = smul.u32 2, %s23
        %p239 = scmp.lt.s32.totalorder %s237, 7
        %s240 = scalar_select %p239, %s237, 7
        %p241 = scmp.lt.s32.totalorder %s238, 1
        %s242 = scalar_select %p241, %s238, 1
        %s243 = smul.addr %s240, 2
        %s244 = sadd.s32 %s242, %s243
        %s245 = smul.addr %s244, 8
        %s246 = scalar_lea.vmem %s2, %s245
        %p247 = pneg %p105
        %p248 = pneg %p102
        %s249 = smul.u32 32, %s23
        %p250 = scmp.lt.s32.totalorder %s249, 31
        %s251 = scalar_select %p250, %s249, 31
        %s252 = smul.addr %s251, 4
        %s253 = scalar_lea.vmem %s3, %s252
        %p254 = pneg %p131
        %p255 = pneg %p128
        %p256 = pneg %p157
        %p257 = pneg %p154
        %s258 = sand.u32 %s144, 1
        %s259 = scalar_lea.sflag [#allocation6], %s258
        %s260 = sand.u32 %s144, 1
        %s261 = smul.addr %s260, 128
        %s262 = scalar_lea.vmem [#allocation5], %s261
        %s263 = smul.u32 16, %s22
        %p264 = scmp.lt.s32.totalorder %s263, 31
        %s265 = scalar_select %p264, %s263, 31
        %s266 = smul.addr %s265, 8
        %s267 = scalar_lea.vmem %s0, %s266
        %s268 = smul.u32 16, %s22
        %s269 = smul.u32 2, %s23
        %p270 = scmp.lt.s32.totalorder %s269, 1
        %s271 = scalar_select %p270, %s269, 1
        %s272 = scalar_lea.vmem %s1, %s271
        %s273 = smul.u32 2, %s23
        %s274 = smul.u32 4, %s22
        %s275 = smul.u32 2, %s23
        %p276 = scmp.lt.s32.totalorder %s274, 7
        %s277 = scalar_select %p276, %s274, 7
        %p278 = scmp.lt.s32.totalorder %s275, 1
        %s279 = scalar_select %p278, %s275, 1
        %s280 = smul.addr %s277, 2
        %s281 = sadd.s32 %s279, %s280
        %s282 = smul.addr %s281, 8
        %s283 = scalar_lea.vmem %s2, %s282
        %s284 = smul.u32 4, %s22
        %s285 = smul.u32 2, %s23
        %s286 = smul.u32 32, %s23
        %p287 = scmp.lt.s32.totalorder %s286, 31
        %s288 = scalar_select %p287, %s286, 31
        %s289 = smul.addr %s288, 4
        %s290 = scalar_lea.vmem %s3, %s289
        %s291 = smul.u32 32, %s23
        %s292 = smul.u32 16, %s22
        %p295 = scmp.eq.s32.totalorder %s23, 0
        // Predicated region
        $region37: #{tpu_custom_call.1} parent=35 // pred_check
          %p296 = pneg %p295
        $region38: #{tpu_custom_call.1} parent=35 // pred_check_branch
          %298 = sbr.rel (%p296) target = $region40
        $region39: #{tpu_custom_call.1} parent=35 // pred_region
          %vm299 = vcmask 7168
          %300 = vst.msk [vmem:[#allocation2] sm:$0xff] %vm299, -inf
          %301 = vst.msk [vmem:[#allocation2 + $0x8] sm:$0xff] %vm299, -inf
          %302 = vst.msk [vmem:[#allocation2 + $0x10] sm:$0xff] %vm299, -inf
          %303 = vst.msk [vmem:[#allocation2 + $0x18] sm:$0xff] %vm299, -inf
          %304 = vst.msk [vmem:[#allocation2 + $0x20] sm:$0xff] %vm299, -inf
          %305 = vst.msk [vmem:[#allocation2 + $0x28] sm:$0xff] %vm299, -inf
          %306 = vst.msk [vmem:[#allocation2 + $0x30] sm:$0xff] %vm299, -inf
          %307 = vst.msk [vmem:[#allocation2 + $0x38] sm:$0xff] %vm299, -inf
          %308 = vst.msk [vmem:[#allocation2 + $0x40] sm:$0xff] %vm299, -inf
          %309 = vst.msk [vmem:[#allocation2 + $0x48] sm:$0xff] %vm299, -inf
          %310 = vst.msk [vmem:[#allocation2 + $0x50] sm:$0xff] %vm299, -inf
          %311 = vst.msk [vmem:[#allocation2 + $0x58] sm:$0xff] %vm299, -inf
          %312 = vst.msk [vmem:[#allocation2 + $0x60] sm:$0xff] %vm299, -inf
          %313 = vst.msk [vmem:[#allocation2 + $0x68] sm:$0xff] %vm299, -inf
          %314 = vst.msk [vmem:[#allocation2 + $0x70] sm:$0xff] %vm299, -inf
          %315 = vst.msk [vmem:[#allocation2 + $0x78] sm:$0xff] %vm299, -inf
          %316 = vst.msk [vmem:[#allocation3] sm:$0xff] %vm299, 0.0
          %317 = vst.msk [vmem:[#allocation3 + $0x8] sm:$0xff] %vm299, 0.0
          %318 = vst.msk [vmem:[#allocation3 + $0x10] sm:$0xff] %vm299, 0.0
          %319 = vst.msk [vmem:[#allocation3 + $0x18] sm:$0xff] %vm299, 0.0
          %320 = vst.msk [vmem:[#allocation3 + $0x20] sm:$0xff] %vm299, 0.0
          %321 = vst.msk [vmem:[#allocation3 + $0x28] sm:$0xff] %vm299, 0.0
          %322 = vst.msk [vmem:[#allocation3 + $0x30] sm:$0xff] %vm299, 0.0
          %323 = vst.msk [vmem:[#allocation3 + $0x38] sm:$0xff] %vm299, 0.0
          %324 = vst.msk [vmem:[#allocation3 + $0x40] sm:$0xff] %vm299, 0.0
          %325 = vst.msk [vmem:[#allocation3 + $0x48] sm:$0xff] %vm299, 0.0
          %326 = vst.msk [vmem:[#allocation3 + $0x50] sm:$0xff] %vm299, 0.0
          %327 = vst.msk [vmem:[#allocation3 + $0x58] sm:$0xff] %vm299, 0.0
          %328 = vst.msk [vmem:[#allocation3 + $0x60] sm:$0xff] %vm299, 0.0
          %329 = vst.msk [vmem:[#allocation3 + $0x68] sm:$0xff] %vm299, 0.0
          %330 = vst.msk [vmem:[#allocation3 + $0x70] sm:$0xff] %vm299, 0.0
          %331 = vst.msk [vmem:[#allocation3 + $0x78] sm:$0xff] %vm299, 0.0
          %332 = vst [vmem:[#allocation4] sm:$0xff] 0.0
          %333 = vst [vmem:[#allocation4 + $0x8] sm:$0xff] 0.0
          %334 = vst [vmem:[#allocation4 + $0x10] sm:$0xff] 0.0
          %335 = vst [vmem:[#allocation4 + $0x18] sm:$0xff] 0.0
          %336 = vst [vmem:[#allocation4 + $0x20] sm:$0xff] 0.0
          %337 = vst [vmem:[#allocation4 + $0x28] sm:$0xff] 0.0
          %338 = vst [vmem:[#allocation4 + $0x30] sm:$0xff] 0.0
          %339 = vst [vmem:[#allocation4 + $0x38] sm:$0xff] 0.0
          %340 = vst [vmem:[#allocation4 + $0x40] sm:$0xff] 0.0
          %341 = vst [vmem:[#allocation4 + $0x48] sm:$0xff] 0.0
          %342 = vst [vmem:[#allocation4 + $0x50] sm:$0xff] 0.0
          %343 = vst [vmem:[#allocation4 + $0x58] sm:$0xff] 0.0
          %344 = vst [vmem:[#allocation4 + $0x60] sm:$0xff] 0.0
          %345 = vst [vmem:[#allocation4 + $0x68] sm:$0xff] 0.0
          %346 = vst [vmem:[#allocation4 + $0x70] sm:$0xff] 0.0
          %347 = vst [vmem:[#allocation4 + $0x78] sm:$0xff] 0.0
        $region40: #{tpu_custom_call.1} parent=35 // pred_fallthru
          _
        %v348 = vld [vmem:[%s267] sm:$0xff]
        %v349 = vld [vmem:[%s267 + $0x8] sm:$0xff]
        %v350 = vld [vmem:[%s267 + $0x10] sm:$0xff]
        %v351 = vld [vmem:[%s267 + $0x18] sm:$0xff]
        %v352 = vld [vmem:[%s267 + $0x20] sm:$0xff]
        %v353 = vld [vmem:[%s267 + $0x28] sm:$0xff]
        %v354 = vld [vmem:[%s267 + $0x30] sm:$0xff]
        %v355 = vld [vmem:[%s267 + $0x38] sm:$0xff]
        %v356 = vld [vmem:[%s267 + $0x40] sm:$0xff]
        %v357 = vld [vmem:[%s267 + $0x48] sm:$0xff]
        %v358 = vld [vmem:[%s267 + $0x50] sm:$0xff]
        %v359 = vld [vmem:[%s267 + $0x58] sm:$0xff]
        %v360 = vld [vmem:[%s267 + $0x60] sm:$0xff]
        %v361 = vld [vmem:[%s267 + $0x68] sm:$0xff]
        %v362 = vld [vmem:[%s267 + $0x70] sm:$0xff]
        %v363 = vld [vmem:[%s267 + $0x78] sm:$0xff]
        %v364 = vld [vmem:[%s272] sm:$0x3]
        %366 = vset.pattern.permute.xlu0 0
        %367 = vperm.xlu0 %366, %v348
        %v368 = vpop.permute.xlu0 %367
        %371 = vset.pattern.permute.xlu0 0
        %372 = vperm.xlu0 %371, %v349
        %v373 = vpop.permute.xlu0 %372
        %376 = vset.pattern.permute.xlu0 0
        %377 = vperm.xlu0 %376, %v350
        %v378 = vpop.permute.xlu0 %377
        %381 = vset.pattern.permute.xlu0 0
        %382 = vperm.xlu0 %381, %v351
        %v383 = vpop.permute.xlu0 %382
        %386 = vset.pattern.permute.xlu0 0
        %387 = vperm.xlu0 %386, %v352
        %v388 = vpop.permute.xlu0 %387
        %391 = vset.pattern.permute.xlu0 0
        %392 = vperm.xlu0 %391, %v353
        %v393 = vpop.permute.xlu0 %392
        %396 = vset.pattern.permute.xlu0 0
        %397 = vperm.xlu0 %396, %v354
        %v398 = vpop.permute.xlu0 %397
        %401 = vset.pattern.permute.xlu0 0
        %402 = vperm.xlu0 %401, %v355
        %v403 = vpop.permute.xlu0 %402
        %406 = vset.pattern.permute.xlu0 0
        %407 = vperm.xlu0 %406, %v356
        %v408 = vpop.permute.xlu0 %407
        %411 = vset.pattern.permute.xlu0 0
        %412 = vperm.xlu0 %411, %v357
        %v413 = vpop.permute.xlu0 %412
        %416 = vset.pattern.permute.xlu0 0
        %417 = vperm.xlu0 %416, %v358
        %v418 = vpop.permute.xlu0 %417
        %421 = vset.pattern.permute.xlu0 0
        %422 = vperm.xlu0 %421, %v359
        %v423 = vpop.permute.xlu0 %422
        %426 = vset.pattern.permute.xlu0 0
        %427 = vperm.xlu0 %426, %v360
        %v428 = vpop.permute.xlu0 %427
        %431 = vset.pattern.permute.xlu0 0
        %432 = vperm.xlu0 %431, %v361
        %v433 = vpop.permute.xlu0 %432
        %436 = vset.pattern.permute.xlu0 0
        %437 = vperm.xlu0 %436, %v362
        %v438 = vpop.permute.xlu0 %437
        %441 = vset.pattern.permute.xlu0 0
        %442 = vperm.xlu0 %441, %v363
        %v443 = vpop.permute.xlu0 %442
        %v446 = vperm.slane %v364, 0
        %v447 = vperm.slane %v364, 1
        %v450 = vadd.f32 %v368, %v446
        %v451 = vadd.f32 %v368, %v447
        %v452 = vadd.f32 %v373, %v446
        %v453 = vadd.f32 %v373, %v447
        %v454 = vadd.f32 %v378, %v446
        %v455 = vadd.f32 %v378, %v447
        %v456 = vadd.f32 %v383, %v446
        %v457 = vadd.f32 %v383, %v447
        %v458 = vadd.f32 %v388, %v446
        %v459 = vadd.f32 %v388, %v447
        %v460 = vadd.f32 %v393, %v446
        %v461 = vadd.f32 %v393, %v447
        %v462 = vadd.f32 %v398, %v446
        %v463 = vadd.f32 %v398, %v447
        %v464 = vadd.f32 %v403, %v446
        %v465 = vadd.f32 %v403, %v447
        %v466 = vadd.f32 %v408, %v446
        %v467 = vadd.f32 %v408, %v447
        %v468 = vadd.f32 %v413, %v446
        %v469 = vadd.f32 %v413, %v447
        %v470 = vadd.f32 %v418, %v446
        %v471 = vadd.f32 %v418, %v447
        %v472 = vadd.f32 %v423, %v446
        %v473 = vadd.f32 %v423, %v447
        %v474 = vadd.f32 %v428, %v446
        %v475 = vadd.f32 %v428, %v447
        %v476 = vadd.f32 %v433, %v446
        %v477 = vadd.f32 %v433, %v447
        %v478 = vadd.f32 %v438, %v446
        %v479 = vadd.f32 %v438, %v447
        %v480 = vadd.f32 %v443, %v446
        %v481 = vadd.f32 %v443, %v447
        %vm482 = vcmp.gt.f32.partialorder %v450, 0.0
        %vm483 = vcmp.gt.f32.partialorder %v451, 0.0
        %vm484 = vcmp.gt.f32.partialorder %v452, 0.0
        %vm485 = vcmp.gt.f32.partialorder %v453, 0.0
        %vm486 = vcmp.gt.f32.partialorder %v454, 0.0
        %vm487 = vcmp.gt.f32.partialorder %v455, 0.0
        %vm488 = vcmp.gt.f32.partialorder %v456, 0.0
        %vm489 = vcmp.gt.f32.partialorder %v457, 0.0
        %vm490 = vcmp.gt.f32.partialorder %v458, 0.0
        %vm491 = vcmp.gt.f32.partialorder %v459, 0.0
        %vm492 = vcmp.gt.f32.partialorder %v460, 0.0
        %vm493 = vcmp.gt.f32.partialorder %v461, 0.0
        %vm494 = vcmp.gt.f32.partialorder %v462, 0.0
        %vm495 = vcmp.gt.f32.partialorder %v463, 0.0
        %vm496 = vcmp.gt.f32.partialorder %v464, 0.0
        %vm497 = vcmp.gt.f32.partialorder %v465, 0.0
        %vm498 = vcmp.gt.f32.partialorder %v466, 0.0
        %vm499 = vcmp.gt.f32.partialorder %v467, 0.0
        %vm500 = vcmp.gt.f32.partialorder %v468, 0.0
        %vm501 = vcmp.gt.f32.partialorder %v469, 0.0
        %vm502 = vcmp.gt.f32.partialorder %v470, 0.0
        %vm503 = vcmp.gt.f32.partialorder %v471, 0.0
        %vm504 = vcmp.gt.f32.partialorder %v472, 0.0
        %vm505 = vcmp.gt.f32.partialorder %v473, 0.0
        %vm506 = vcmp.gt.f32.partialorder %v474, 0.0
        %vm507 = vcmp.gt.f32.partialorder %v475, 0.0
        %vm508 = vcmp.gt.f32.partialorder %v476, 0.0
        %vm509 = vcmp.gt.f32.partialorder %v477, 0.0
        %vm510 = vcmp.gt.f32.partialorder %v478, 0.0
        %vm511 = vcmp.gt.f32.partialorder %v479, 0.0
        %vm512 = vcmp.gt.f32.partialorder %v480, 0.0
        %vm513 = vcmp.gt.f32.partialorder %v481, 0.0
        %v514 = vmul.f32 %v450, 1.442695
        %v515 = vpow.pop %v514
        %v516 = vmul.f32 %v451, 1.442695
        %v517 = vpow.pop %v516
        %v518 = vmul.f32 %v452, 1.442695
        %v519 = vpow.pop %v518
        %v520 = vmul.f32 %v453, 1.442695
        %v521 = vpow.pop %v520
        %v522 = vmul.f32 %v454, 1.442695
        %v523 = vpow.pop %v522
        %v524 = vmul.f32 %v455, 1.442695
        %v525 = vpow.pop %v524
        %v526 = vmul.f32 %v456, 1.442695
        %v527 = vpow.pop %v526
        %v528 = vmul.f32 %v457, 1.442695
        %v529 = vpow.pop %v528
        %v530 = vmul.f32 %v458, 1.442695
        %v531 = vpow.pop %v530
        %v532 = vmul.f32 %v459, 1.442695
        %v533 = vpow.pop %v532
        %v534 = vmul.f32 %v460, 1.442695
        %v535 = vpow.pop %v534
        %v536 = vmul.f32 %v461, 1.442695
        %v537 = vpow.pop %v536
        %v538 = vmul.f32 %v462, 1.442695
        %v539 = vpow.pop %v538
        %v540 = vmul.f32 %v463, 1.442695
        %v541 = vpow.pop %v540
        %v542 = vmul.f32 %v464, 1.442695
        %v543 = vpow.pop %v542
        %v544 = vmul.f32 %v465, 1.442695
        %v545 = vpow.pop %v544
        %v546 = vmul.f32 %v466, 1.442695
        %v547 = vpow.pop %v546
        %v548 = vmul.f32 %v467, 1.442695
        %v549 = vpow.pop %v548
        %v550 = vmul.f32 %v468, 1.442695
        %v551 = vpow.pop %v550
        %v552 = vmul.f32 %v469, 1.442695
        %v553 = vpow.pop %v552
        %v554 = vmul.f32 %v470, 1.442695
        %v555 = vpow.pop %v554
        %v556 = vmul.f32 %v471, 1.442695
        %v557 = vpow.pop %v556
        %v558 = vmul.f32 %v472, 1.442695
        %v559 = vpow.pop %v558
        %v560 = vmul.f32 %v473, 1.442695
        %v561 = vpow.pop %v560
        %v562 = vmul.f32 %v474, 1.442695
        %v563 = vpow.pop %v562
        %v564 = vmul.f32 %v475, 1.442695
        %v565 = vpow.pop %v564
        %v566 = vmul.f32 %v476, 1.442695
        %v567 = vpow.pop %v566
        %v568 = vmul.f32 %v477, 1.442695
        %v569 = vpow.pop %v568
        %v570 = vmul.f32 %v478, 1.442695
        %v571 = vpow.pop %v570
        %v572 = vmul.f32 %v479, 1.442695
        %v573 = vpow.pop %v572
        %v574 = vmul.f32 %v480, 1.442695
        %v575 = vpow.pop %v574
        %v576 = vmul.f32 %v481, 1.442695
        %v577 = vpow.pop %v576
        %v578 = vsub.f32 %v515, 1.0
        %v579 = vsub.f32 %v517, 1.0
        %v580 = vsub.f32 %v519, 1.0
        %v581 = vsub.f32 %v521, 1.0
        %v582 = vsub.f32 %v523, 1.0
        %v583 = vsub.f32 %v525, 1.0
        %v584 = vsub.f32 %v527, 1.0
        %v585 = vsub.f32 %v529, 1.0
        %v586 = vsub.f32 %v531, 1.0
        %v587 = vsub.f32 %v533, 1.0
        %v588 = vsub.f32 %v535, 1.0
        %v589 = vsub.f32 %v537, 1.0
        %v590 = vsub.f32 %v539, 1.0
        %v591 = vsub.f32 %v541, 1.0
        %v592 = vsub.f32 %v543, 1.0
        %v593 = vsub.f32 %v545, 1.0
        %v594 = vsub.f32 %v547, 1.0
        %v595 = vsub.f32 %v549, 1.0
        %v596 = vsub.f32 %v551, 1.0
        %v597 = vsub.f32 %v553, 1.0
        %v598 = vsub.f32 %v555, 1.0
        %v599 = vsub.f32 %v557, 1.0
        %v600 = vsub.f32 %v559, 1.0
        %v601 = vsub.f32 %v561, 1.0
        %v602 = vsub.f32 %v563, 1.0
        %v603 = vsub.f32 %v565, 1.0
        %v604 = vsub.f32 %v567, 1.0
        %v605 = vsub.f32 %v569, 1.0
        %v606 = vsub.f32 %v571, 1.0
        %v607 = vsub.f32 %v573, 1.0
        %v608 = vsub.f32 %v575, 1.0
        %v609 = vsub.f32 %v577, 1.0
        %v610 = vsel %vm482, %v450, %v578
        %v611 = vsel %vm483, %v451, %v579
        %v612 = vsel %vm484, %v452, %v580
        %v613 = vsel %vm485, %v453, %v581
        %v614 = vsel %vm486, %v454, %v582
        %v615 = vsel %vm487, %v455, %v583
        %v616 = vsel %vm488, %v456, %v584
        %v617 = vsel %vm489, %v457, %v585
        %v618 = vsel %vm490, %v458, %v586
        %v619 = vsel %vm491, %v459, %v587
        %v620 = vsel %vm492, %v460, %v588
        %v621 = vsel %vm493, %v461, %v589
        %v622 = vsel %vm494, %v462, %v590
        %v623 = vsel %vm495, %v463, %v591
        %v624 = vsel %vm496, %v464, %v592
        %v625 = vsel %vm497, %v465, %v593
        %v626 = vsel %vm498, %v466, %v594
        %v627 = vsel %vm499, %v467, %v595
        %v628 = vsel %vm500, %v468, %v596
        %v629 = vsel %vm501, %v469, %v597
        %v630 = vsel %vm502, %v470, %v598
        %v631 = vsel %vm503, %v471, %v599
        %v632 = vsel %vm504, %v472, %v600
        %v633 = vsel %vm505, %v473, %v601
        %v634 = vsel %vm506, %v474, %v602
        %v635 = vsel %vm507, %v475, %v603
        %v636 = vsel %vm508, %v476, %v604
        %v637 = vsel %vm509, %v477, %v605
        %v638 = vsel %vm510, %v478, %v606
        %v639 = vsel %vm511, %v479, %v607
        %v640 = vsel %vm512, %v480, %v608
        %v641 = vsel %vm513, %v481, %v609
        %v642 = vld [vmem:[%s283] sm:$0xff]
        %v643 = vld [vmem:[%s283 + $0x8] sm:$0xff]
        %v644 = vld [vmem:[%s283 + $0x10] sm:$0xff]
        %v645 = vld [vmem:[%s283 + $0x18] sm:$0xff]
        %v646 = vld [vmem:[%s283 + $0x20] sm:$0xff]
        %v647 = vld [vmem:[%s283 + $0x28] sm:$0xff]
        %v648 = vld [vmem:[%s283 + $0x30] sm:$0xff]
        %v649 = vld [vmem:[%s283 + $0x38] sm:$0xff]
        %vm650 = vnez %v642
        %vm651 = vnez %v643
        %vm652 = vnez %v644
        %vm653 = vnez %v645
        %vm654 = vnez %v646
        %vm655 = vnez %v647
        %vm656 = vnez %v648
        %vm657 = vnez %v649
        %v658 = vsel %vm650, 16843009, 0
        %v659 = vsel %vm651, 16843009, 0
        %v660 = vsel %vm652, 16843009, 0
        %v661 = vsel %vm653, 16843009, 0
        %v662 = vsel %vm654, 16843009, 0
        %v663 = vsel %vm655, 16843009, 0
        %v664 = vsel %vm656, 16843009, 0
        %v665 = vsel %vm657, 16843009, 0
        %v666 = vunpack.c.0.s8 %v658
        %v667 = vunpack.c.0.s8 %v659
        %v668 = vunpack.c.1.s8 %v658
        %v669 = vunpack.c.1.s8 %v659
        %v670 = vunpack.c.2.s8 %v658
        %v671 = vunpack.c.2.s8 %v659
        %v672 = vunpack.c.3.s8 %v658
        %v673 = vunpack.c.3.s8 %v659
        %v674 = vunpack.c.0.s8 %v660
        %v675 = vunpack.c.0.s8 %v661
        %v676 = vunpack.c.1.s8 %v660
        %v677 = vunpack.c.1.s8 %v661
        %v678 = vunpack.c.2.s8 %v660
        %v679 = vunpack.c.2.s8 %v661
        %v680 = vunpack.c.3.s8 %v660
        %v681 = vunpack.c.3.s8 %v661
        %v682 = vunpack.c.0.s8 %v662
        %v683 = vunpack.c.0.s8 %v663
        %v684 = vunpack.c.1.s8 %v662
        %v685 = vunpack.c.1.s8 %v663
        %v686 = vunpack.c.2.s8 %v662
        %v687 = vunpack.c.2.s8 %v663
        %v688 = vunpack.c.3.s8 %v662
        %v689 = vunpack.c.3.s8 %v663
        %v690 = vunpack.c.0.s8 %v664
        %v691 = vunpack.c.0.s8 %v665
        %v692 = vunpack.c.1.s8 %v664
        %v693 = vunpack.c.1.s8 %v665
        %v694 = vunpack.c.2.s8 %v664
        %v695 = vunpack.c.2.s8 %v665
        %v696 = vunpack.c.3.s8 %v664
        %v697 = vunpack.c.3.s8 %v665
        %v698 = vpack.c.b16 %v667, %v666
        %v699 = vpack.c.b8 %v698, %v698
        %v700 = vpack.c.b16 %v669, %v668
        %v701 = vpack.c.b8 %v700, %v700
        %v702 = vpack.c.b16 %v671, %v670
        %v703 = vpack.c.b8 %v702, %v702
        %v704 = vpack.c.b16 %v673, %v672
        %v705 = vpack.c.b8 %v704, %v704
        %v706 = vpack.c.b16 %v675, %v674
        %v707 = vpack.c.b8 %v706, %v706
        %v708 = vpack.c.b16 %v677, %v676
        %v709 = vpack.c.b8 %v708, %v708
        %v710 = vpack.c.b16 %v679, %v678
        %v711 = vpack.c.b8 %v710, %v710
        %v712 = vpack.c.b16 %v681, %v680
        %v713 = vpack.c.b8 %v712, %v712
        %v714 = vpack.c.b16 %v683, %v682
        %v715 = vpack.c.b8 %v714, %v714
        %v716 = vpack.c.b16 %v685, %v684
        %v717 = vpack.c.b8 %v716, %v716
        %v718 = vpack.c.b16 %v687, %v686
        %v719 = vpack.c.b8 %v718, %v718
        %v720 = vpack.c.b16 %v689, %v688
        %v721 = vpack.c.b8 %v720, %v720
        %v722 = vpack.c.b16 %v691, %v690
        %v723 = vpack.c.b8 %v722, %v722
        %v724 = vpack.c.b16 %v693, %v692
        %v725 = vpack.c.b8 %v724, %v724
        %v726 = vpack.c.b16 %v695, %v694
        %v727 = vpack.c.b8 %v726, %v726
        %v728 = vpack.c.b16 %v697, %v696
        %v729 = vpack.c.b8 %v728, %v728
        %vm730 = vnez %v699
        %vm731 = vnez %v701
        %vm732 = vnez %v703
        %vm733 = vnez %v705
        %vm734 = vnez %v707
        %vm735 = vnez %v709
        %vm736 = vnez %v711
        %vm737 = vnez %v713
        %vm738 = vnez %v715
        %vm739 = vnez %v717
        %vm740 = vnez %v719
        %vm741 = vnez %v721
        %vm742 = vnez %v723
        %vm743 = vnez %v725
        %vm744 = vnez %v727
        %vm745 = vnez %v729
        %v746 = vsel %vm730, 16843009, 0
        %v747 = vsel %vm731, 16843009, 0
        %v748 = vsel %vm732, 16843009, 0
        %v749 = vsel %vm733, 16843009, 0
        %v750 = vsel %vm734, 16843009, 0
        %v751 = vsel %vm735, 16843009, 0
        %v752 = vsel %vm736, 16843009, 0
        %v753 = vsel %vm737, 16843009, 0
        %v754 = vsel %vm738, 16843009, 0
        %v755 = vsel %vm739, 16843009, 0
        %v756 = vsel %vm740, 16843009, 0
        %v757 = vsel %vm741, 16843009, 0
        %v758 = vsel %vm742, 16843009, 0
        %v759 = vsel %vm743, 16843009, 0
        %v760 = vsel %vm744, 16843009, 0
        %v761 = vsel %vm745, 16843009, 0
        %v762 = vunpack.c.0.s8 %v746
        %v763 = vunpack.c.1.s8 %v746
        %v764 = vunpack.c.0.s8 %v747
        %v765 = vunpack.c.1.s8 %v747
        %v766 = vunpack.c.0.s8 %v748
        %v767 = vunpack.c.1.s8 %v748
        %v768 = vunpack.c.0.s8 %v749
        %v769 = vunpack.c.1.s8 %v749
        %v770 = vunpack.c.0.s8 %v750
        %v771 = vunpack.c.1.s8 %v750
        %v772 = vunpack.c.0.s8 %v751
        %v773 = vunpack.c.1.s8 %v751
        %v774 = vunpack.c.0.s8 %v752
        %v775 = vunpack.c.1.s8 %v752
        %v776 = vunpack.c.0.s8 %v753
        %v777 = vunpack.c.1.s8 %v753
        %v778 = vunpack.c.0.s8 %v754
        %v779 = vunpack.c.1.s8 %v754
        %v780 = vunpack.c.0.s8 %v755
        %v781 = vunpack.c.1.s8 %v755
        %v782 = vunpack.c.0.s8 %v756
        %v783 = vunpack.c.1.s8 %v756
        %v784 = vunpack.c.0.s8 %v757
        %v785 = vunpack.c.1.s8 %v757
        %v786 = vunpack.c.0.s8 %v758
        %v787 = vunpack.c.1.s8 %v758
        %v788 = vunpack.c.0.s8 %v759
        %v789 = vunpack.c.1.s8 %v759
        %v790 = vunpack.c.0.s8 %v760
        %v791 = vunpack.c.1.s8 %v760
        %v792 = vunpack.c.0.s8 %v761
        %v793 = vunpack.c.1.s8 %v761
        %vm794 = vcmp.ne.s32.totalorder %v762, 0
        %vm795 = vcmp.ne.s32.totalorder %v763, 0
        %vm796 = vcmp.ne.s32.totalorder %v764, 0
        %vm797 = vcmp.ne.s32.totalorder %v765, 0
        %vm798 = vcmp.ne.s32.totalorder %v766, 0
        %vm799 = vcmp.ne.s32.totalorder %v767, 0
        %vm800 = vcmp.ne.s32.totalorder %v768, 0
        %vm801 = vcmp.ne.s32.totalorder %v769, 0
        %vm802 = vcmp.ne.s32.totalorder %v770, 0
        %vm803 = vcmp.ne.s32.totalorder %v771, 0
        %vm804 = vcmp.ne.s32.totalorder %v772, 0
        %vm805 = vcmp.ne.s32.totalorder %v773, 0
        %vm806 = vcmp.ne.s32.totalorder %v774, 0
        %vm807 = vcmp.ne.s32.totalorder %v775, 0
        %vm808 = vcmp.ne.s32.totalorder %v776, 0
        %vm809 = vcmp.ne.s32.totalorder %v777, 0
        %vm810 = vcmp.ne.s32.totalorder %v778, 0
        %vm811 = vcmp.ne.s32.totalorder %v779, 0
        %vm812 = vcmp.ne.s32.totalorder %v780, 0
        %vm813 = vcmp.ne.s32.totalorder %v781, 0
        %vm814 = vcmp.ne.s32.totalorder %v782, 0
        %vm815 = vcmp.ne.s32.totalorder %v783, 0
        %vm816 = vcmp.ne.s32.totalorder %v784, 0
        %vm817 = vcmp.ne.s32.totalorder %v785, 0
        %vm818 = vcmp.ne.s32.totalorder %v786, 0
        %vm819 = vcmp.ne.s32.totalorder %v787, 0
        %vm820 = vcmp.ne.s32.totalorder %v788, 0
        %vm821 = vcmp.ne.s32.totalorder %v789, 0
        %vm822 = vcmp.ne.s32.totalorder %v790, 0
        %vm823 = vcmp.ne.s32.totalorder %v791, 0
        %vm824 = vcmp.ne.s32.totalorder %v792, 0
        %vm825 = vcmp.ne.s32.totalorder %v793, 0
        %v826 = vsel %vm794, %v610, -9e+15
        %v827 = vsel %vm795, %v611, -9e+15
        %v828 = vsel %vm796, %v612, -9e+15
        %v829 = vsel %vm797, %v613, -9e+15
        %v830 = vsel %vm798, %v614, -9e+15
        %v831 = vsel %vm799, %v615, -9e+15
        %v832 = vsel %vm800, %v616, -9e+15
        %v833 = vsel %vm801, %v617, -9e+15
        %v834 = vsel %vm802, %v618, -9e+15
        %v835 = vsel %vm803, %v619, -9e+15
        %v836 = vsel %vm804, %v620, -9e+15
        %v837 = vsel %vm805, %v621, -9e+15
        %v838 = vsel %vm806, %v622, -9e+15
        %v839 = vsel %vm807, %v623, -9e+15
        %v840 = vsel %vm808, %v624, -9e+15
        %v841 = vsel %vm809, %v625, -9e+15
        %v842 = vsel %vm810, %v626, -9e+15
        %v843 = vsel %vm811, %v627, -9e+15
        %v844 = vsel %vm812, %v628, -9e+15
        %v845 = vsel %vm813, %v629, -9e+15
        %v846 = vsel %vm814, %v630, -9e+15
        %v847 = vsel %vm815, %v631, -9e+15
        %v848 = vsel %vm816, %v632, -9e+15
        %v849 = vsel %vm817, %v633, -9e+15
        %v850 = vsel %vm818, %v634, -9e+15
        %v851 = vsel %vm819, %v635, -9e+15
        %v852 = vsel %vm820, %v636, -9e+15
        %v853 = vsel %vm821, %v637, -9e+15
        %v854 = vsel %vm822, %v638, -9e+15
        %v855 = vsel %vm823, %v639, -9e+15
        %v856 = vsel %vm824, %v640, -9e+15
        %v857 = vsel %vm825, %v641, -9e+15
        %v858 = vld [vmem:[#allocation2] sm:$0xff]
        %v859 = vld [vmem:[#allocation2 + $0x8] sm:$0xff]
        %v860 = vld [vmem:[#allocation2 + $0x10] sm:$0xff]
        %v861 = vld [vmem:[#allocation2 + $0x18] sm:$0xff]
        %v862 = vld [vmem:[#allocation2 + $0x20] sm:$0xff]
        %v863 = vld [vmem:[#allocation2 + $0x28] sm:$0xff]
        %v864 = vld [vmem:[#allocation2 + $0x30] sm:$0xff]
        %v865 = vld [vmem:[#allocation2 + $0x38] sm:$0xff]
        %v866 = vld [vmem:[#allocation2 + $0x40] sm:$0xff]
        %v867 = vld [vmem:[#allocation2 + $0x48] sm:$0xff]
        %v868 = vld [vmem:[#allocation2 + $0x50] sm:$0xff]
        %v869 = vld [vmem:[#allocation2 + $0x58] sm:$0xff]
        %v870 = vld [vmem:[#allocation2 + $0x60] sm:$0xff]
        %v871 = vld [vmem:[#allocation2 + $0x68] sm:$0xff]
        %v872 = vld [vmem:[#allocation2 + $0x70] sm:$0xff]
        %v873 = vld [vmem:[#allocation2 + $0x78] sm:$0xff]
        %v874 = vmax.f32 %v826, %v827
        %875 = vmax.xlane.f32.xlu0 %v874
        %v876 = vpop.xlane.xlu0 %875
        %v877 = vmax.f32 %v828, %v829
        %878 = vmax.xlane.f32.xlu0 %v877
        %v879 = vpop.xlane.xlu0 %878
        %v880 = vmax.f32 %v830, %v831
        %881 = vmax.xlane.f32.xlu0 %v880
        %v882 = vpop.xlane.xlu0 %881
        %v883 = vmax.f32 %v832, %v833
        %884 = vmax.xlane.f32.xlu0 %v883
        %v885 = vpop.xlane.xlu0 %884
        %v886 = vmax.f32 %v834, %v835
        %887 = vmax.xlane.f32.xlu0 %v886
        %v888 = vpop.xlane.xlu0 %887
        %v889 = vmax.f32 %v836, %v837
        %890 = vmax.xlane.f32.xlu0 %v889
        %v891 = vpop.xlane.xlu0 %890
        %v892 = vmax.f32 %v838, %v839
        %893 = vmax.xlane.f32.xlu0 %v892
        %v894 = vpop.xlane.xlu0 %893
        %v895 = vmax.f32 %v840, %v841
        %896 = vmax.xlane.f32.xlu0 %v895
        %v897 = vpop.xlane.xlu0 %896
        %v898 = vmax.f32 %v842, %v843
        %899 = vmax.xlane.f32.xlu0 %v898
        %v900 = vpop.xlane.xlu0 %899
        %v901 = vmax.f32 %v844, %v845
        %902 = vmax.xlane.f32.xlu0 %v901
        %v903 = vpop.xlane.xlu0 %902
        %v904 = vmax.f32 %v846, %v847
        %905 = vmax.xlane.f32.xlu0 %v904
        %v906 = vpop.xlane.xlu0 %905
        %v907 = vmax.f32 %v848, %v849
        %908 = vmax.xlane.f32.xlu0 %v907
        %v909 = vpop.xlane.xlu0 %908
        %v910 = vmax.f32 %v850, %v851
        %911 = vmax.xlane.f32.xlu0 %v910
        %v912 = vpop.xlane.xlu0 %911
        %v913 = vmax.f32 %v852, %v853
        %914 = vmax.xlane.f32.xlu0 %v913
        %v915 = vpop.xlane.xlu0 %914
        %v916 = vmax.f32 %v854, %v855
        %917 = vmax.xlane.f32.xlu0 %v916
        %v918 = vpop.xlane.xlu0 %917
        %v919 = vmax.f32 %v856, %v857
        %920 = vmax.xlane.f32.xlu0 %v919
        %v921 = vpop.xlane.xlu0 %920
        %v922 = vmax.f32 %v858, %v876
        %v923 = vmax.f32 %v859, %v879
        %v924 = vmax.f32 %v860, %v882
        %v925 = vmax.f32 %v861, %v885
        %v926 = vmax.f32 %v862, %v888
        %v927 = vmax.f32 %v863, %v891
        %v928 = vmax.f32 %v864, %v894
        %v929 = vmax.f32 %v865, %v897
        %v930 = vmax.f32 %v866, %v900
        %v931 = vmax.f32 %v867, %v903
        %v932 = vmax.f32 %v868, %v906
        %v933 = vmax.f32 %v869, %v909
        %v934 = vmax.f32 %v870, %v912
        %v935 = vmax.f32 %v871, %v915
        %v936 = vmax.f32 %v872, %v918
        %v937 = vmax.f32 %v873, %v921
        %v938 = vsub.f32 %v858, %v922
        %v939 = vsub.f32 %v859, %v923
        %v940 = vsub.f32 %v860, %v924
        %v941 = vsub.f32 %v861, %v925
        %v942 = vsub.f32 %v862, %v926
        %v943 = vsub.f32 %v863, %v927
        %v944 = vsub.f32 %v864, %v928
        %v945 = vsub.f32 %v865, %v929
        %v946 = vsub.f32 %v866, %v930
        %v947 = vsub.f32 %v867, %v931
        %v948 = vsub.f32 %v868, %v932
        %v949 = vsub.f32 %v869, %v933
        %v950 = vsub.f32 %v870, %v934
        %v951 = vsub.f32 %v871, %v935
        %v952 = vsub.f32 %v872, %v936
        %v953 = vsub.f32 %v873, %v937
        %v954 = vmul.f32 %v938, 1.442695
        %v955 = vpow.pop %v954
        %v956 = vmul.f32 %v939, 1.442695
        %v957 = vpow.pop %v956
        %v958 = vmul.f32 %v940, 1.442695
        %v959 = vpow.pop %v958
        %v960 = vmul.f32 %v941, 1.442695
        %v961 = vpow.pop %v960
        %v962 = vmul.f32 %v942, 1.442695
        %v963 = vpow.pop %v962
        %v964 = vmul.f32 %v943, 1.442695
        %v965 = vpow.pop %v964
        %v966 = vmul.f32 %v944, 1.442695
        %v967 = vpow.pop %v966
        %v968 = vmul.f32 %v945, 1.442695
        %v969 = vpow.pop %v968
        %v970 = vmul.f32 %v946, 1.442695
        %v971 = vpow.pop %v970
        %v972 = vmul.f32 %v947, 1.442695
        %v973 = vpow.pop %v972
        %v974 = vmul.f32 %v948, 1.442695
        %v975 = vpow.pop %v974
        %v976 = vmul.f32 %v949, 1.442695
        %v977 = vpow.pop %v976
        %v978 = vmul.f32 %v950, 1.442695
        %v979 = vpow.pop %v978
        %v980 = vmul.f32 %v951, 1.442695
        %v981 = vpow.pop %v980
        %v982 = vmul.f32 %v952, 1.442695
        %v983 = vpow.pop %v982
        %v984 = vmul.f32 %v953, 1.442695
        %v985 = vpow.pop %v984
        %987 = vset.pattern.permute.xlu0 0
        %988 = vperm.xlu0 %987, %v922
        %v989 = vpop.permute.xlu0 %988
        %992 = vset.pattern.permute.xlu0 0
        %993 = vperm.xlu0 %992, %v923
        %v994 = vpop.permute.xlu0 %993
        %997 = vset.pattern.permute.xlu0 0
        %998 = vperm.xlu0 %997, %v924
        %v999 = vpop.permute.xlu0 %998
        %1002 = vset.pattern.permute.xlu0 0
        %1003 = vperm.xlu0 %1002, %v925
        %v1004 = vpop.permute.xlu0 %1003
        %1007 = vset.pattern.permute.xlu0 0
        %1008 = vperm.xlu0 %1007, %v926
        %v1009 = vpop.permute.xlu0 %1008
        %1012 = vset.pattern.permute.xlu0 0
        %1013 = vperm.xlu0 %1012, %v927
        %v1014 = vpop.permute.xlu0 %1013
        %1017 = vset.pattern.permute.xlu0 0
        %1018 = vperm.xlu0 %1017, %v928
        %v1019 = vpop.permute.xlu0 %1018
        %1022 = vset.pattern.permute.xlu0 0
        %1023 = vperm.xlu0 %1022, %v929
        %v1024 = vpop.permute.xlu0 %1023
        %1027 = vset.pattern.permute.xlu0 0
        %1028 = vperm.xlu0 %1027, %v930
        %v1029 = vpop.permute.xlu0 %1028
        %1032 = vset.pattern.permute.xlu0 0
        %1033 = vperm.xlu0 %1032, %v931
        %v1034 = vpop.permute.xlu0 %1033
        %1037 = vset.pattern.permute.xlu0 0
        %1038 = vperm.xlu0 %1037, %v932
        %v1039 = vpop.permute.xlu0 %1038
        %1042 = vset.pattern.permute.xlu0 0
        %1043 = vperm.xlu0 %1042, %v933
        %v1044 = vpop.permute.xlu0 %1043
        %1047 = vset.pattern.permute.xlu0 0
        %1048 = vperm.xlu0 %1047, %v934
        %v1049 = vpop.permute.xlu0 %1048
        %1052 = vset.pattern.permute.xlu0 0
        %1053 = vperm.xlu0 %1052, %v935
        %v1054 = vpop.permute.xlu0 %1053
        %1057 = vset.pattern.permute.xlu0 0
        %1058 = vperm.xlu0 %1057, %v936
        %v1059 = vpop.permute.xlu0 %1058
        %1062 = vset.pattern.permute.xlu0 0
        %1063 = vperm.xlu0 %1062, %v937
        %v1064 = vpop.permute.xlu0 %1063
        %v1066 = vsub.f32 %v826, %v989
        %v1067 = vsub.f32 %v827, %v989
        %v1068 = vsub.f32 %v828, %v994
        %v1069 = vsub.f32 %v829, %v994
        %v1070 = vsub.f32 %v830, %v999
        %v1071 = vsub.f32 %v831, %v999
        %v1072 = vsub.f32 %v832, %v1004
        %v1073 = vsub.f32 %v833, %v1004
        %v1074 = vsub.f32 %v834, %v1009
        %v1075 = vsub.f32 %v835, %v1009
        %v1076 = vsub.f32 %v836, %v1014
        %v1077 = vsub.f32 %v837, %v1014
        %v1078 = vsub.f32 %v838, %v1019
        %v1079 = vsub.f32 %v839, %v1019
        %v1080 = vsub.f32 %v840, %v1024
        %v1081 = vsub.f32 %v841, %v1024
        %v1082 = vsub.f32 %v842, %v1029
        %v1083 = vsub.f32 %v843, %v1029
        %v1084 = vsub.f32 %v844, %v1034
        %v1085 = vsub.f32 %v845, %v1034
        %v1086 = vsub.f32 %v846, %v1039
        %v1087 = vsub.f32 %v847, %v1039
        %v1088 = vsub.f32 %v848, %v1044
        %v1089 = vsub.f32 %v849, %v1044
        %v1090 = vsub.f32 %v850, %v1049
        %v1091 = vsub.f32 %v851, %v1049
        %v1092 = vsub.f32 %v852, %v1054
        %v1093 = vsub.f32 %v853, %v1054
        %v1094 = vsub.f32 %v854, %v1059
        %v1095 = vsub.f32 %v855, %v1059
        %v1096 = vsub.f32 %v856, %v1064
        %v1097 = vsub.f32 %v857, %v1064
        %v1098 = vmul.f32 %v1066, 1.442695
        %v1099 = vpow.pop %v1098
        %v1100 = vmul.f32 %v1067, 1.442695
        %v1101 = vpow.pop %v1100
        %v1102 = vmul.f32 %v1068, 1.442695
        %v1103 = vpow.pop %v1102
        %v1104 = vmul.f32 %v1069, 1.442695
        %v1105 = vpow.pop %v1104
        %v1106 = vmul.f32 %v1070, 1.442695
        %v1107 = vpow.pop %v1106
        %v1108 = vmul.f32 %v1071, 1.442695
        %v1109 = vpow.pop %v1108
        %v1110 = vmul.f32 %v1072, 1.442695
        %v1111 = vpow.pop %v1110
        %v1112 = vmul.f32 %v1073, 1.442695
        %v1113 = vpow.pop %v1112
        %v1114 = vmul.f32 %v1074, 1.442695
        %v1115 = vpow.pop %v1114
        %v1116 = vmul.f32 %v1075, 1.442695
        %v1117 = vpow.pop %v1116
        %v1118 = vmul.f32 %v1076, 1.442695
        %v1119 = vpow.pop %v1118
        %v1120 = vmul.f32 %v1077, 1.442695
        %v1121 = vpow.pop %v1120
        %v1122 = vmul.f32 %v1078, 1.442695
        %v1123 = vpow.pop %v1122
        %v1124 = vmul.f32 %v1079, 1.442695
        %v1125 = vpow.pop %v1124
        %v1126 = vmul.f32 %v1080, 1.442695
        %v1127 = vpow.pop %v1126
        %v1128 = vmul.f32 %v1081, 1.442695
        %v1129 = vpow.pop %v1128
        %v1130 = vmul.f32 %v1082, 1.442695
        %v1131 = vpow.pop %v1130
        %v1132 = vmul.f32 %v1083, 1.442695
        %v1133 = vpow.pop %v1132
        %v1134 = vmul.f32 %v1084, 1.442695
        %v1135 = vpow.pop %v1134
        %v1136 = vmul.f32 %v1085, 1.442695
        %v1137 = vpow.pop %v1136
        %v1138 = vmul.f32 %v1086, 1.442695
        %v1139 = vpow.pop %v1138
        %v1140 = vmul.f32 %v1087, 1.442695
        %v1141 = vpow.pop %v1140
        %v1142 = vmul.f32 %v1088, 1.442695
        %v1143 = vpow.pop %v1142
        %v1144 = vmul.f32 %v1089, 1.442695
        %v1145 = vpow.pop %v1144
        %v1146 = vmul.f32 %v1090, 1.442695
        %v1147 = vpow.pop %v1146
        %v1148 = vmul.f32 %v1091, 1.442695
        %v1149 = vpow.pop %v1148
        %v1150 = vmul.f32 %v1092, 1.442695
        %v1151 = vpow.pop %v1150
        %v1152 = vmul.f32 %v1093, 1.442695
        %v1153 = vpow.pop %v1152
        %v1154 = vmul.f32 %v1094, 1.442695
        %v1155 = vpow.pop %v1154
        %v1156 = vmul.f32 %v1095, 1.442695
        %v1157 = vpow.pop %v1156
        %v1158 = vmul.f32 %v1096, 1.442695
        %v1159 = vpow.pop %v1158
        %v1160 = vmul.f32 %v1097, 1.442695
        %v1161 = vpow.pop %v1160
        %v1162 = vld [vmem:[#allocation3] sm:$0xff]
        %v1163 = vld [vmem:[#allocation3 + $0x8] sm:$0xff]
        %v1164 = vld [vmem:[#allocation3 + $0x10] sm:$0xff]
        %v1165 = vld [vmem:[#allocation3 + $0x18] sm:$0xff]
        %v1166 = vld [vmem:[#allocation3 + $0x20] sm:$0xff]
        %v1167 = vld [vmem:[#allocation3 + $0x28] sm:$0xff]
        %v1168 = vld [vmem:[#allocation3 + $0x30] sm:$0xff]
        %v1169 = vld [vmem:[#allocation3 + $0x38] sm:$0xff]
        %v1170 = vld [vmem:[#allocation3 + $0x40] sm:$0xff]
        %v1171 = vld [vmem:[#allocation3 + $0x48] sm:$0xff]
        %v1172 = vld [vmem:[#allocation3 + $0x50] sm:$0xff]
        %v1173 = vld [vmem:[#allocation3 + $0x58] sm:$0xff]
        %v1174 = vld [vmem:[#allocation3 + $0x60] sm:$0xff]
        %v1175 = vld [vmem:[#allocation3 + $0x68] sm:$0xff]
        %v1176 = vld [vmem:[#allocation3 + $0x70] sm:$0xff]
        %v1177 = vld [vmem:[#allocation3 + $0x78] sm:$0xff]
        %v1178 = vmul.f32 %v955, %v1162
        %v1179 = vmul.f32 %v957, %v1163
        %v1180 = vmul.f32 %v959, %v1164
        %v1181 = vmul.f32 %v961, %v1165
        %v1182 = vmul.f32 %v963, %v1166
        %v1183 = vmul.f32 %v965, %v1167
        %v1184 = vmul.f32 %v967, %v1168
        %v1185 = vmul.f32 %v969, %v1169
        %v1186 = vmul.f32 %v971, %v1170
        %v1187 = vmul.f32 %v973, %v1171
        %v1188 = vmul.f32 %v975, %v1172
        %v1189 = vmul.f32 %v977, %v1173
        %v1190 = vmul.f32 %v979, %v1174
        %v1191 = vmul.f32 %v981, %v1175
        %v1192 = vmul.f32 %v983, %v1176
        %v1193 = vmul.f32 %v985, %v1177
        %v1194 = vadd.f32 %v1099, %v1101
        %1195 = vadd.xlane.f32.xlu0 %v1194
        %v1196 = vpop.xlane.xlu0 %1195
        %v1197 = vadd.f32 %v1103, %v1105
        %1198 = vadd.xlane.f32.xlu0 %v1197
        %v1199 = vpop.xlane.xlu0 %1198
        %v1200 = vadd.f32 %v1107, %v1109
        %1201 = vadd.xlane.f32.xlu0 %v1200
        %v1202 = vpop.xlane.xlu0 %1201
        %v1203 = vadd.f32 %v1111, %v1113
        %1204 = vadd.xlane.f32.xlu0 %v1203
        %v1205 = vpop.xlane.xlu0 %1204
        %v1206 = vadd.f32 %v1115, %v1117
        %1207 = vadd.xlane.f32.xlu0 %v1206
        %v1208 = vpop.xlane.xlu0 %1207
        %v1209 = vadd.f32 %v1119, %v1121
        %1210 = vadd.xlane.f32.xlu0 %v1209
        %v1211 = vpop.xlane.xlu0 %1210
        %v1212 = vadd.f32 %v1123, %v1125
        %1213 = vadd.xlane.f32.xlu0 %v1212
        %v1214 = vpop.xlane.xlu0 %1213
        %v1215 = vadd.f32 %v1127, %v1129
        %1216 = vadd.xlane.f32.xlu0 %v1215
        %v1217 = vpop.xlane.xlu0 %1216
        %v1218 = vadd.f32 %v1131, %v1133
        %1219 = vadd.xlane.f32.xlu0 %v1218
        %v1220 = vpop.xlane.xlu0 %1219
        %v1221 = vadd.f32 %v1135, %v1137
        %1222 = vadd.xlane.f32.xlu0 %v1221
        %v1223 = vpop.xlane.xlu0 %1222
        %v1224 = vadd.f32 %v1139, %v1141
        %1225 = vadd.xlane.f32.xlu0 %v1224
        %v1226 = vpop.xlane.xlu0 %1225
        %v1227 = vadd.f32 %v1143, %v1145
        %1228 = vadd.xlane.f32.xlu0 %v1227
        %v1229 = vpop.xlane.xlu0 %1228
        %v1230 = vadd.f32 %v1147, %v1149
        %1231 = vadd.xlane.f32.xlu0 %v1230
        %v1232 = vpop.xlane.xlu0 %1231
        %v1233 = vadd.f32 %v1151, %v1153
        %1234 = vadd.xlane.f32.xlu0 %v1233
        %v1235 = vpop.xlane.xlu0 %1234
        %v1236 = vadd.f32 %v1155, %v1157
        %1237 = vadd.xlane.f32.xlu0 %v1236
        %v1238 = vpop.xlane.xlu0 %1237
        %v1239 = vadd.f32 %v1159, %v1161
        %1240 = vadd.xlane.f32.xlu0 %v1239
        %v1241 = vpop.xlane.xlu0 %1240
        %v1242 = vadd.f32 %v1178, %v1196
        %v1243 = vadd.f32 %v1179, %v1199
        %v1244 = vadd.f32 %v1180, %v1202
        %v1245 = vadd.f32 %v1181, %v1205
        %v1246 = vadd.f32 %v1182, %v1208
        %v1247 = vadd.f32 %v1183, %v1211
        %v1248 = vadd.f32 %v1184, %v1214
        %v1249 = vadd.f32 %v1185, %v1217
        %v1250 = vadd.f32 %v1186, %v1220
        %v1251 = vadd.f32 %v1187, %v1223
        %v1252 = vadd.f32 %v1188, %v1226
        %v1253 = vadd.f32 %v1189, %v1229
        %v1254 = vadd.f32 %v1190, %v1232
        %v1255 = vadd.f32 %v1191, %v1235
        %v1256 = vadd.f32 %v1192, %v1238
        %v1257 = vadd.f32 %v1193, %v1241
        %vm1258 = vcmask 7168
        %1259 = vst.msk [vmem:[#allocation3] sm:$0xff] %vm1258, %v1242
        %1260 = vst.msk [vmem:[#allocation3 + $0x8] sm:$0xff] %vm1258, %v1243
        %1261 = vst.msk [vmem:[#allocation3 + $0x10] sm:$0xff] %vm1258, %v1244
        %1262 = vst.msk [vmem:[#allocation3 + $0x18] sm:$0xff] %vm1258, %v1245
        %1263 = vst.msk [vmem:[#allocation3 + $0x20] sm:$0xff] %vm1258, %v1246
        %1264 = vst.msk [vmem:[#allocation3 + $0x28] sm:$0xff] %vm1258, %v1247
        %1265 = vst.msk [vmem:[#allocation3 + $0x30] sm:$0xff] %vm1258, %v1248
        %1266 = vst.msk [vmem:[#allocation3 + $0x38] sm:$0xff] %vm1258, %v1249
        %1267 = vst.msk [vmem:[#allocation3 + $0x40] sm:$0xff] %vm1258, %v1250
        %1268 = vst.msk [vmem:[#allocation3 + $0x48] sm:$0xff] %vm1258, %v1251
        %1269 = vst.msk [vmem:[#allocation3 + $0x50] sm:$0xff] %vm1258, %v1252
        %1270 = vst.msk [vmem:[#allocation3 + $0x58] sm:$0xff] %vm1258, %v1253
        %1271 = vst.msk [vmem:[#allocation3 + $0x60] sm:$0xff] %vm1258, %v1254
        %1272 = vst.msk [vmem:[#allocation3 + $0x68] sm:$0xff] %vm1258, %v1255
        %1273 = vst.msk [vmem:[#allocation3 + $0x70] sm:$0xff] %vm1258, %v1256
        %1274 = vst.msk [vmem:[#allocation3 + $0x78] sm:$0xff] %vm1258, %v1257
        %v1275 = vld [vmem:[#allocation4] sm:$0xff]
        %v1276 = vld [vmem:[#allocation4 + $0x8] sm:$0xff]
        %v1277 = vld [vmem:[#allocation4 + $0x10] sm:$0xff]
        %v1278 = vld [vmem:[#allocation4 + $0x18] sm:$0xff]
        %v1279 = vld [vmem:[#allocation4 + $0x20] sm:$0xff]
        %v1280 = vld [vmem:[#allocation4 + $0x28] sm:$0xff]
        %v1281 = vld [vmem:[#allocation4 + $0x30] sm:$0xff]
        %v1282 = vld [vmem:[#allocation4 + $0x38] sm:$0xff]
        %v1283 = vld [vmem:[#allocation4 + $0x40] sm:$0xff]
        %v1284 = vld [vmem:[#allocation4 + $0x48] sm:$0xff]
        %v1285 = vld [vmem:[#allocation4 + $0x50] sm:$0xff]
        %v1286 = vld [vmem:[#allocation4 + $0x58] sm:$0xff]
        %v1287 = vld [vmem:[#allocation4 + $0x60] sm:$0xff]
        %v1288 = vld [vmem:[#allocation4 + $0x68] sm:$0xff]
        %v1289 = vld [vmem:[#allocation4 + $0x70] sm:$0xff]
        %v1290 = vld [vmem:[#allocation4 + $0x78] sm:$0xff]
        %1292 = vset.pattern.permute.xlu0 0
        %1293 = vperm.xlu0 %1292, %v955
        %v1294 = vpop.permute.xlu0 %1293
        %1297 = vset.pattern.permute.xlu0 0
        %1298 = vperm.xlu0 %1297, %v957
        %v1299 = vpop.permute.xlu0 %1298
        %1302 = vset.pattern.permute.xlu0 0
        %1303 = vperm.xlu0 %1302, %v959
        %v1304 = vpop.permute.xlu0 %1303
        %1307 = vset.pattern.permute.xlu0 0
        %1308 = vperm.xlu0 %1307, %v961
        %v1309 = vpop.permute.xlu0 %1308
        %1312 = vset.pattern.permute.xlu0 0
        %1313 = vperm.xlu0 %1312, %v963
        %v1314 = vpop.permute.xlu0 %1313
        %1317 = vset.pattern.permute.xlu0 0
        %1318 = vperm.xlu0 %1317, %v965
        %v1319 = vpop.permute.xlu0 %1318
        %1322 = vset.pattern.permute.xlu0 0
        %1323 = vperm.xlu0 %1322, %v967
        %v1324 = vpop.permute.xlu0 %1323
        %1327 = vset.pattern.permute.xlu0 0
        %1328 = vperm.xlu0 %1327, %v969
        %v1329 = vpop.permute.xlu0 %1328
        %1332 = vset.pattern.permute.xlu0 0
        %1333 = vperm.xlu0 %1332, %v971
        %v1334 = vpop.permute.xlu0 %1333
        %1337 = vset.pattern.permute.xlu0 0
        %1338 = vperm.xlu0 %1337, %v973
        %v1339 = vpop.permute.xlu0 %1338
        %1342 = vset.pattern.permute.xlu0 0
        %1343 = vperm.xlu0 %1342, %v975
        %v1344 = vpop.permute.xlu0 %1343
        %1347 = vset.pattern.permute.xlu0 0
        %1348 = vperm.xlu0 %1347, %v977
        %v1349 = vpop.permute.xlu0 %1348
        %1352 = vset.pattern.permute.xlu0 0
        %1353 = vperm.xlu0 %1352, %v979
        %v1354 = vpop.permute.xlu0 %1353
        %1357 = vset.pattern.permute.xlu0 0
        %1358 = vperm.xlu0 %1357, %v981
        %v1359 = vpop.permute.xlu0 %1358
        %1362 = vset.pattern.permute.xlu0 0
        %1363 = vperm.xlu0 %1362, %v983
        %v1364 = vpop.permute.xlu0 %1363
        %1367 = vset.pattern.permute.xlu0 0
        %1368 = vperm.xlu0 %1367, %v985
        %v1369 = vpop.permute.xlu0 %1368
        %v1371 = vmul.f32 %v1294, %v1275
        %v1372 = vmul.f32 %v1299, %v1276
        %v1373 = vmul.f32 %v1304, %v1277
        %v1374 = vmul.f32 %v1309, %v1278
        %v1375 = vmul.f32 %v1314, %v1279
        %v1376 = vmul.f32 %v1319, %v1280
        %v1377 = vmul.f32 %v1324, %v1281
        %v1378 = vmul.f32 %v1329, %v1282
        %v1379 = vmul.f32 %v1334, %v1283
        %v1380 = vmul.f32 %v1339, %v1284
        %v1381 = vmul.f32 %v1344, %v1285
        %v1382 = vmul.f32 %v1349, %v1286
        %v1383 = vmul.f32 %v1354, %v1287
        %v1384 = vmul.f32 %v1359, %v1288
        %v1385 = vmul.f32 %v1364, %v1289
        %v1386 = vmul.f32 %v1369, %v1290
        %v1387 = vpack.c.bf16 %v1103, %v1099
        %v1388 = vpack.c.bf16 %v1105, %v1101
        %v1389 = vpack.c.bf16 %v1111, %v1107
        %v1390 = vpack.c.bf16 %v1113, %v1109
        %v1391 = vpack.c.bf16 %v1119, %v1115
        %v1392 = vpack.c.bf16 %v1121, %v1117
        %v1393 = vpack.c.bf16 %v1127, %v1123
        %v1394 = vpack.c.bf16 %v1129, %v1125
        %v1395 = vpack.c.bf16 %v1135, %v1131
        %v1396 = vpack.c.bf16 %v1137, %v1133
        %v1397 = vpack.c.bf16 %v1143, %v1139
        %v1398 = vpack.c.bf16 %v1145, %v1141
        %v1399 = vpack.c.bf16 %v1151, %v1147
        %v1400 = vpack.c.bf16 %v1153, %v1149
        %v1401 = vpack.c.bf16 %v1159, %v1155
        %v1402 = vpack.c.bf16 %v1161, %v1157
        %v1403 = vld [vmem:[%s290] sm:$0xf]
        %v1404 = vld [vmem:[%s290 + $0x4] sm:$0xf]
        %v1405 = vld [vmem:[%s290 + $0x8] sm:$0xf]
        %v1406 = vld [vmem:[%s290 + $0xc] sm:$0xf]
        %v1407 = vld [vmem:[%s290 + $0x10] sm:$0xf]
        %v1408 = vld [vmem:[%s290 + $0x14] sm:$0xf]
        %v1409 = vld [vmem:[%s290 + $0x18] sm:$0xf]
        %v1410 = vld [vmem:[%s290 + $0x1c] sm:$0xf]
        %v1411 = vld [vmem:[%s290 + $0x20] sm:$0xf]
        %v1412 = vld [vmem:[%s290 + $0x24] sm:$0xf]
        %v1413 = vld [vmem:[%s290 + $0x28] sm:$0xf]
        %v1414 = vld [vmem:[%s290 + $0x2c] sm:$0xf]
        %v1415 = vld [vmem:[%s290 + $0x30] sm:$0xf]
        %v1416 = vld [vmem:[%s290 + $0x34] sm:$0xf]
        %v1417 = vld [vmem:[%s290 + $0x38] sm:$0xf]
        %v1418 = vld [vmem:[%s290 + $0x3c] sm:$0xf]
        %v1419 = vld [vmem:[%s290 + $0x40] sm:$0xf]
        %v1420 = vld [vmem:[%s290 + $0x44] sm:$0xf]
        %v1421 = vld [vmem:[%s290 + $0x48] sm:$0xf]
        %v1422 = vld [vmem:[%s290 + $0x4c] sm:$0xf]
        %v1423 = vld [vmem:[%s290 + $0x50] sm:$0xf]
        %v1424 = vld [vmem:[%s290 + $0x54] sm:$0xf]
        %v1425 = vld [vmem:[%s290 + $0x58] sm:$0xf]
        %v1426 = vld [vmem:[%s290 + $0x5c] sm:$0xf]
        %v1427 = vld [vmem:[%s290 + $0x60] sm:$0xf]
        %v1428 = vld [vmem:[%s290 + $0x64] sm:$0xf]
        %v1429 = vld [vmem:[%s290 + $0x68] sm:$0xf]
        %v1430 = vld [vmem:[%s290 + $0x6c] sm:$0xf]
        %v1431 = vld [vmem:[%s290 + $0x70] sm:$0xf]
        %v1432 = vld [vmem:[%s290 + $0x74] sm:$0xf]
        %v1433 = vld [vmem:[%s290 + $0x78] sm:$0xf]
        %v1434 = vld [vmem:[%s290 + $0x7c] sm:$0xf]
        %v1467 = vunpack.c.l.b16 %v1403
        %v1468 = vunpack.c.l.b16 %v1404
        %v1469 = vunpack.c.l.b16 %v1405
        %v1470 = vunpack.c.l.b16 %v1406
        %v1471 = vunpack.c.l.b16 %v1407
        %v1472 = vunpack.c.l.b16 %v1408
        %v1473 = vunpack.c.l.b16 %v1409
        %v1474 = vunpack.c.l.b16 %v1410
        %v1475 = vunpack.c.l.b16 %v1411
        %v1476 = vunpack.c.l.b16 %v1412
        %v1477 = vunpack.c.l.b16 %v1413
        %v1478 = vunpack.c.l.b16 %v1414
        %v1479 = vunpack.c.l.b16 %v1415
        %v1480 = vunpack.c.l.b16 %v1416
        %v1481 = vunpack.c.l.b16 %v1417
        %v1482 = vunpack.c.l.b16 %v1418
        %v1483 = vunpack.c.l.b16 %v1419
        %v1484 = vunpack.c.l.b16 %v1420
        %v1485 = vunpack.c.l.b16 %v1421
        %v1486 = vunpack.c.l.b16 %v1422
        %v1487 = vunpack.c.l.b16 %v1423
        %v1488 = vunpack.c.l.b16 %v1424
        %v1489 = vunpack.c.l.b16 %v1425
        %v1490 = vunpack.c.l.b16 %v1426
        %v1491 = vunpack.c.l.b16 %v1427
        %v1492 = vunpack.c.l.b16 %v1428
        %v1493 = vunpack.c.l.b16 %v1429
        %v1494 = vunpack.c.l.b16 %v1430
        %v1495 = vunpack.c.l.b16 %v1431
        %v1496 = vunpack.c.l.b16 %v1432
        %v1497 = vunpack.c.l.b16 %v1433
        %v1498 = vunpack.c.l.b16 %v1434
        %v1499 = vpack.c.b16 %v1468, %v1467
        %v1500 = vpack.c.b16 %v1470, %v1469
        %v1501 = vpack.c.b16 %v1472, %v1471
        %v1502 = vpack.c.b16 %v1474, %v1473
        %v1503 = vpack.c.b16 %v1476, %v1475
        %v1504 = vpack.c.b16 %v1478, %v1477
        %v1505 = vpack.c.b16 %v1480, %v1479
        %v1506 = vpack.c.b16 %v1482, %v1481
        %v1507 = vpack.c.b16 %v1484, %v1483
        %v1508 = vpack.c.b16 %v1486, %v1485
        %v1509 = vpack.c.b16 %v1488, %v1487
        %v1510 = vpack.c.b16 %v1490, %v1489
        %v1511 = vpack.c.b16 %v1492, %v1491
        %v1512 = vpack.c.b16 %v1494, %v1493
        %v1513 = vpack.c.b16 %v1496, %v1495
        %v1514 = vpack.c.b16 %v1498, %v1497
        %1531 = vmatpush.bf16.msra.mxu0 %v1506
        %1532 = vmatpush.bf16.msra.mxu0 %v1505
        %1533 = vmatpush.bf16.msra.mxu0 %v1504
        %1534 = vmatpush.bf16.msra.mxu0 %v1503
        %1535 = vmatpush.bf16.msra.mxu0 %v1502
        %1536 = vmatpush.bf16.msra.mxu0 %v1501
        %1537 = vmatpush.bf16.msra.mxu0 %v1500
        %1538 = vmatpush.bf16.msra.mxu0 %v1499
        %1539 = vmatmul.bf16.gmra.mxu0 %v1387
        %v1540 = vpop.f32.mrf.mxu0
        %v1541 = vadd.f32 0.0, %v1540
        %v1542 = vpop.f32.mrf.mxu0
        %v1543 = vadd.f32 0.0, %v1542
        %1544 = vmatmul.bf16.gmra.mxu0 %v1389
        %v1545 = vpop.f32.mrf.mxu0
        %v1546 = vadd.f32 0.0, %v1545
        %v1547 = vpop.f32.mrf.mxu0
        %v1548 = vadd.f32 0.0, %v1547
        %1549 = vmatmul.bf16.gmra.mxu0 %v1391
        %v1550 = vpop.f32.mrf.mxu0
        %v1551 = vadd.f32 0.0, %v1550
        %v1552 = vpop.f32.mrf.mxu0
        %v1553 = vadd.f32 0.0, %v1552
        %1554 = vmatmul.bf16.gmra.mxu0 %v1393
        %v1555 = vpop.f32.mrf.mxu0
        %v1556 = vadd.f32 0.0, %v1555
        %v1557 = vpop.f32.mrf.mxu0
        %v1558 = vadd.f32 0.0, %v1557
        %1559 = vmatmul.bf16.gmra.mxu0 %v1395
        %v1560 = vpop.f32.mrf.mxu0
        %v1561 = vadd.f32 0.0, %v1560
        %v1562 = vpop.f32.mrf.mxu0
        %v1563 = vadd.f32 0.0, %v1562
        %1564 = vmatmul.bf16.gmra.mxu0 %v1397
        %v1565 = vpop.f32.mrf.mxu0
        %v1566 = vadd.f32 0.0, %v1565
        %v1567 = vpop.f32.mrf.mxu0
        %v1568 = vadd.f32 0.0, %v1567
        %1569 = vmatmul.bf16.gmra.mxu0 %v1399
        %v1570 = vpop.f32.mrf.mxu0
        %v1571 = vadd.f32 0.0, %v1570
        %v1572 = vpop.f32.mrf.mxu0
        %v1573 = vadd.f32 0.0, %v1572
        %1574 = vmatmul.bf16.gmra.mxu0 %v1401
        %v1575 = vpop.f32.mrf.mxu0
        %v1576 = vadd.f32 0.0, %v1575
        %v1577 = vpop.f32.mrf.mxu0
        %v1578 = vadd.f32 0.0, %v1577
        %1579 = vdwg.mxu0
        %1580 = vmatpush.bf16.msra.mxu0 %v1514
        %1581 = vmatpush.bf16.msra.mxu0 %v1513
        %1582 = vmatpush.bf16.msra.mxu0 %v1512
        %1583 = vmatpush.bf16.msra.mxu0 %v1511
        %1584 = vmatpush.bf16.msra.mxu0 %v1510
        %1585 = vmatpush.bf16.msra.mxu0 %v1509
        %1586 = vmatpush.bf16.msra.mxu0 %v1508
        %1587 = vmatpush.bf16.msra.mxu0 %v1507
        %1588 = vmatmul.bf16.gmra.mxu0 %v1388
        %v1589 = vpop.f32.mrf.mxu0
        %v1590 = vadd.f32 %v1541, %v1589
        %v1591 = vpop.f32.mrf.mxu0
        %v1592 = vadd.f32 %v1543, %v1591
        %1593 = vmatmul.bf16.gmra.mxu0 %v1390
        %v1594 = vpop.f32.mrf.mxu0
        %v1595 = vadd.f32 %v1546, %v1594
        %v1596 = vpop.f32.mrf.mxu0
        %v1597 = vadd.f32 %v1548, %v1596
        %1598 = vmatmul.bf16.gmra.mxu0 %v1392
        %v1599 = vpop.f32.mrf.mxu0
        %v1600 = vadd.f32 %v1551, %v1599
        %v1601 = vpop.f32.mrf.mxu0
        %v1602 = vadd.f32 %v1553, %v1601
        %1603 = vmatmul.bf16.gmra.mxu0 %v1394
        %v1604 = vpop.f32.mrf.mxu0
        %v1605 = vadd.f32 %v1556, %v1604
        %v1606 = vpop.f32.mrf.mxu0
        %v1607 = vadd.f32 %v1558, %v1606
        %1608 = vmatmul.bf16.gmra.mxu0 %v1396
        %v1609 = vpop.f32.mrf.mxu0
        %v1610 = vadd.f32 %v1561, %v1609
        %v1611 = vpop.f32.mrf.mxu0
        %v1612 = vadd.f32 %v1563, %v1611
        %1613 = vmatmul.bf16.gmra.mxu0 %v1398
        %v1614 = vpop.f32.mrf.mxu0
        %v1615 = vadd.f32 %v1566, %v1614
        %v1616 = vpop.f32.mrf.mxu0
        %v1617 = vadd.f32 %v1568, %v1616
        %1618 = vmatmul.bf16.gmra.mxu0 %v1400
        %v1619 = vpop.f32.mrf.mxu0
        %v1620 = vadd.f32 %v1571, %v1619
        %v1621 = vpop.f32.mrf.mxu0
        %v1622 = vadd.f32 %v1573, %v1621
        %1623 = vmatmul.bf16.gmra.mxu0 %v1402
        %v1624 = vpop.f32.mrf.mxu0
        %v1625 = vadd.f32 %v1576, %v1624
        %v1626 = vpop.f32.mrf.mxu0
        %v1627 = vadd.f32 %v1578, %v1626
        %1628 = vdwg.mxu0
        %v1629 = vadd.f32 %v1371, %v1590
        %v1630 = vadd.f32 %v1372, %v1592
        %v1631 = vadd.f32 %v1373, %v1595
        %v1632 = vadd.f32 %v1374, %v1597
        %v1633 = vadd.f32 %v1375, %v1600
        %v1634 = vadd.f32 %v1376, %v1602
        %v1635 = vadd.f32 %v1377, %v1605
        %v1636 = vadd.f32 %v1378, %v1607
        %v1637 = vadd.f32 %v1379, %v1610
        %v1638 = vadd.f32 %v1380, %v1612
        %v1639 = vadd.f32 %v1381, %v1615
        %v1640 = vadd.f32 %v1382, %v1617
        %v1641 = vadd.f32 %v1383, %v1620
        %v1642 = vadd.f32 %v1384, %v1622
        %v1643 = vadd.f32 %v1385, %v1625
        %v1644 = vadd.f32 %v1386, %v1627
        %1645 = vst [vmem:[#allocation4] sm:$0xff] %v1629
        %1646 = vst [vmem:[#allocation4 + $0x8] sm:$0xff] %v1630
        %1647 = vst [vmem:[#allocation4 + $0x10] sm:$0xff] %v1631
        %1648 = vst [vmem:[#allocation4 + $0x18] sm:$0xff] %v1632
        %1649 = vst [vmem:[#allocation4 + $0x20] sm:$0xff] %v1633
        %1650 = vst [vmem:[#allocation4 + $0x28] sm:$0xff] %v1634
        %1651 = vst [vmem:[#allocation4 + $0x30] sm:$0xff] %v1635
        %1652 = vst [vmem:[#allocation4 + $0x38] sm:$0xff] %v1636
        %1653 = vst [vmem:[#allocation4 + $0x40] sm:$0xff] %v1637
        %1654 = vst [vmem:[#allocation4 + $0x48] sm:$0xff] %v1638
        %1655 = vst [vmem:[#allocation4 + $0x50] sm:$0xff] %v1639
        %1656 = vst [vmem:[#allocation4 + $0x58] sm:$0xff] %v1640
        %1657 = vst [vmem:[#allocation4 + $0x60] sm:$0xff] %v1641
        %1658 = vst [vmem:[#allocation4 + $0x68] sm:$0xff] %v1642
        %1659 = vst [vmem:[#allocation4 + $0x70] sm:$0xff] %v1643
        %1660 = vst [vmem:[#allocation4 + $0x78] sm:$0xff] %v1644
        %1661 = vst.msk [vmem:[#allocation2] sm:$0xff] %vm1258, %v922
        %1662 = vst.msk [vmem:[#allocation2 + $0x8] sm:$0xff] %vm1258, %v923
        %1663 = vst.msk [vmem:[#allocation2 + $0x10] sm:$0xff] %vm1258, %v924
        %1664 = vst.msk [vmem:[#allocation2 + $0x18] sm:$0xff] %vm1258, %v925
        %1665 = vst.msk [vmem:[#allocation2 + $0x20] sm:$0xff] %vm1258, %v926
        %1666 = vst.msk [vmem:[#allocation2 + $0x28] sm:$0xff] %vm1258, %v927
        %1667 = vst.msk [vmem:[#allocation2 + $0x30] sm:$0xff] %vm1258, %v928
        %1668 = vst.msk [vmem:[#allocation2 + $0x38] sm:$0xff] %vm1258, %v929
        %1669 = vst.msk [vmem:[#allocation2 + $0x40] sm:$0xff] %vm1258, %v930
        %1670 = vst.msk [vmem:[#allocation2 + $0x48] sm:$0xff] %vm1258, %v931
        %1671 = vst.msk [vmem:[#allocation2 + $0x50] sm:$0xff] %vm1258, %v932
        %1672 = vst.msk [vmem:[#allocation2 + $0x58] sm:$0xff] %vm1258, %v933
        %1673 = vst.msk [vmem:[#allocation2 + $0x60] sm:$0xff] %vm1258, %v934
        %1674 = vst.msk [vmem:[#allocation2 + $0x68] sm:$0xff] %vm1258, %v935
        %1675 = vst.msk [vmem:[#allocation2 + $0x70] sm:$0xff] %vm1258, %v936
        %1676 = vst.msk [vmem:[#allocation2 + $0x78] sm:$0xff] %vm1258, %v937
        // Predicated region
        $region41: #{tpu_custom_call.1} parent=35 // pred_check
          %p1677 = pneg %p295
        $region42: #{tpu_custom_call.1} parent=35 // pred_check_branch
          %1679 = sbr.rel (%p1677) target = $region44
        $region43: #{tpu_custom_call.1} parent=35 // pred_region
          %v1680 = vld [vmem:[#allocation3] sm:$0xff]
          %v1681 = vld [vmem:[#allocation3 + $0x8] sm:$0xff]
          %v1682 = vld [vmem:[#allocation3 + $0x10] sm:$0xff]
          %v1683 = vld [vmem:[#allocation3 + $0x18] sm:$0xff]
          %v1684 = vld [vmem:[#allocation3 + $0x20] sm:$0xff]
          %v1685 = vld [vmem:[#allocation3 + $0x28] sm:$0xff]
          %v1686 = vld [vmem:[#allocation3 + $0x30] sm:$0xff]
          %v1687 = vld [vmem:[#allocation3 + $0x38] sm:$0xff]
          %v1688 = vld [vmem:[#allocation3 + $0x40] sm:$0xff]
          %v1689 = vld [vmem:[#allocation3 + $0x48] sm:$0xff]
          %v1690 = vld [vmem:[#allocation3 + $0x50] sm:$0xff]
          %v1691 = vld [vmem:[#allocation3 + $0x58] sm:$0xff]
          %v1692 = vld [vmem:[#allocation3 + $0x60] sm:$0xff]
          %v1693 = vld [vmem:[#allocation3 + $0x68] sm:$0xff]
          %v1694 = vld [vmem:[#allocation3 + $0x70] sm:$0xff]
          %v1695 = vld [vmem:[#allocation3 + $0x78] sm:$0xff]
          %v1696 = vrcp.pop %v1680
          %v1697 = vrcp.pop %v1681
          %v1698 = vrcp.pop %v1682
          %v1699 = vrcp.pop %v1683
          %v1700 = vrcp.pop %v1684
          %v1701 = vrcp.pop %v1685
          %v1702 = vrcp.pop %v1686
          %v1703 = vrcp.pop %v1687
          %v1704 = vrcp.pop %v1688
          %v1705 = vrcp.pop %v1689
          %v1706 = vrcp.pop %v1690
          %v1707 = vrcp.pop %v1691
          %v1708 = vrcp.pop %v1692
          %v1709 = vrcp.pop %v1693
          %v1710 = vrcp.pop %v1694
          %v1711 = vrcp.pop %v1695
          %v1712 = vld [vmem:[#allocation4] sm:$0xff]
          %v1713 = vld [vmem:[#allocation4 + $0x8] sm:$0xff]
          %v1714 = vld [vmem:[#allocation4 + $0x10] sm:$0xff]
          %v1715 = vld [vmem:[#allocation4 + $0x18] sm:$0xff]
          %v1716 = vld [vmem:[#allocation4 + $0x20] sm:$0xff]
          %v1717 = vld [vmem:[#allocation4 + $0x28] sm:$0xff]
          %v1718 = vld [vmem:[#allocation4 + $0x30] sm:$0xff]
          %v1719 = vld [vmem:[#allocation4 + $0x38] sm:$0xff]
          %v1720 = vld [vmem:[#allocation4 + $0x40] sm:$0xff]
          %v1721 = vld [vmem:[#allocation4 + $0x48] sm:$0xff]
          %v1722 = vld [vmem:[#allocation4 + $0x50] sm:$0xff]
          %v1723 = vld [vmem:[#allocation4 + $0x58] sm:$0xff]
          %v1724 = vld [vmem:[#allocation4 + $0x60] sm:$0xff]
          %v1725 = vld [vmem:[#allocation4 + $0x68] sm:$0xff]
          %v1726 = vld [vmem:[#allocation4 + $0x70] sm:$0xff]
          %v1727 = vld [vmem:[#allocation4 + $0x78] sm:$0xff]
          %1729 = vset.pattern.permute.xlu0 0
          %1730 = vperm.xlu0 %1729, %v1696
          %v1731 = vpop.permute.xlu0 %1730
          %1734 = vset.pattern.permute.xlu0 0
          %1735 = vperm.xlu0 %1734, %v1697
          %v1736 = vpop.permute.xlu0 %1735
          %1739 = vset.pattern.permute.xlu0 0
          %1740 = vperm.xlu0 %1739, %v1698
          %v1741 = vpop.permute.xlu0 %1740
          %1744 = vset.pattern.permute.xlu0 0
          %1745 = vperm.xlu0 %1744, %v1699
          %v1746 = vpop.permute.xlu0 %1745
          %1749 = vset.pattern.permute.xlu0 0
          %1750 = vperm.xlu0 %1749, %v1700
          %v1751 = vpop.permute.xlu0 %1750
          %1754 = vset.pattern.permute.xlu0 0
          %1755 = vperm.xlu0 %1754, %v1701
          %v1756 = vpop.permute.xlu0 %1755
          %1759 = vset.pattern.permute.xlu0 0
          %1760 = vperm.xlu0 %1759, %v1702
          %v1761 = vpop.permute.xlu0 %1760
          %1764 = vset.pattern.permute.xlu0 0
          %1765 = vperm.xlu0 %1764, %v1703
          %v1766 = vpop.permute.xlu0 %1765
          %1769 = vset.pattern.permute.xlu0 0
          %1770 = vperm.xlu0 %1769, %v1704
          %v1771 = vpop.permute.xlu0 %1770
          %1774 = vset.pattern.permute.xlu0 0
          %1775 = vperm.xlu0 %1774, %v1705
          %v1776 = vpop.permute.xlu0 %1775
          %1779 = vset.pattern.permute.xlu0 0
          %1780 = vperm.xlu0 %1779, %v1706
          %v1781 = vpop.permute.xlu0 %1780
          %1784 = vset.pattern.permute.xlu0 0
          %1785 = vperm.xlu0 %1784, %v1707
          %v1786 = vpop.permute.xlu0 %1785
          %1789 = vset.pattern.permute.xlu0 0
          %1790 = vperm.xlu0 %1789, %v1708
          %v1791 = vpop.permute.xlu0 %1790
          %1794 = vset.pattern.permute.xlu0 0
          %1795 = vperm.xlu0 %1794, %v1709
          %v1796 = vpop.permute.xlu0 %1795
          %1799 = vset.pattern.permute.xlu0 0
          %1800 = vperm.xlu0 %1799, %v1710
          %v1801 = vpop.permute.xlu0 %1800
          %1804 = vset.pattern.permute.xlu0 0
          %1805 = vperm.xlu0 %1804, %v1711
          %v1806 = vpop.permute.xlu0 %1805
          %v1808 = vmul.f32 %v1712, %v1731
          %v1809 = vmul.f32 %v1713, %v1736
          %v1810 = vmul.f32 %v1714, %v1741
          %v1811 = vmul.f32 %v1715, %v1746
          %v1812 = vmul.f32 %v1716, %v1751
          %v1813 = vmul.f32 %v1717, %v1756
          %v1814 = vmul.f32 %v1718, %v1761
          %v1815 = vmul.f32 %v1719, %v1766
          %v1816 = vmul.f32 %v1720, %v1771
          %v1817 = vmul.f32 %v1721, %v1776
          %v1818 = vmul.f32 %v1722, %v1781
          %v1819 = vmul.f32 %v1723, %v1786
          %v1820 = vmul.f32 %v1724, %v1791
          %v1821 = vmul.f32 %v1725, %v1796
          %v1822 = vmul.f32 %v1726, %v1801
          %v1823 = vmul.f32 %v1727, %v1806
          %vm1824 = vcmp.gt.f32.partialorder %v1808, 0.0
          %vm1825 = vcmp.gt.f32.partialorder %v1809, 0.0
          %vm1826 = vcmp.gt.f32.partialorder %v1810, 0.0
          %vm1827 = vcmp.gt.f32.partialorder %v1811, 0.0
          %vm1828 = vcmp.gt.f32.partialorder %v1812, 0.0
          %vm1829 = vcmp.gt.f32.partialorder %v1813, 0.0
          %vm1830 = vcmp.gt.f32.partialorder %v1814, 0.0
          %vm1831 = vcmp.gt.f32.partialorder %v1815, 0.0
          %vm1832 = vcmp.gt.f32.partialorder %v1816, 0.0
          %vm1833 = vcmp.gt.f32.partialorder %v1817, 0.0
          %vm1834 = vcmp.gt.f32.partialorder %v1818, 0.0
          %vm1835 = vcmp.gt.f32.partialorder %v1819, 0.0
          %vm1836 = vcmp.gt.f32.partialorder %v1820, 0.0
          %vm1837 = vcmp.gt.f32.partialorder %v1821, 0.0
          %vm1838 = vcmp.gt.f32.partialorder %v1822, 0.0
          %vm1839 = vcmp.gt.f32.partialorder %v1823, 0.0
          %v1840 = vmul.f32 %v1808, 1.442695
          %v1841 = vpow.pop %v1840
          %v1842 = vmul.f32 %v1809, 1.442695
          %v1843 = vpow.pop %v1842
          %v1844 = vmul.f32 %v1810, 1.442695
          %v1845 = vpow.pop %v1844
          %v1846 = vmul.f32 %v1811, 1.442695
          %v1847 = vpow.pop %v1846
          %v1848 = vmul.f32 %v1812, 1.442695
          %v1849 = vpow.pop %v1848
          %v1850 = vmul.f32 %v1813, 1.442695
          %v1851 = vpow.pop %v1850
          %v1852 = vmul.f32 %v1814, 1.442695
          %v1853 = vpow.pop %v1852
          %v1854 = vmul.f32 %v1815, 1.442695
          %v1855 = vpow.pop %v1854
          %v1856 = vmul.f32 %v1816, 1.442695
          %v1857 = vpow.pop %v1856
          %v1858 = vmul.f32 %v1817, 1.442695
          %v1859 = vpow.pop %v1858
          %v1860 = vmul.f32 %v1818, 1.442695
          %v1861 = vpow.pop %v1860
          %v1862 = vmul.f32 %v1819, 1.442695
          %v1863 = vpow.pop %v1862
          %v1864 = vmul.f32 %v1820, 1.442695
          %v1865 = vpow.pop %v1864
          %v1866 = vmul.f32 %v1821, 1.442695
          %v1867 = vpow.pop %v1866
          %v1868 = vmul.f32 %v1822, 1.442695
          %v1869 = vpow.pop %v1868
          %v1870 = vmul.f32 %v1823, 1.442695
          %v1871 = vpow.pop %v1870
          %v1872 = vsub.f32 %v1841, 1.0
          %v1873 = vsub.f32 %v1843, 1.0
          %v1874 = vsub.f32 %v1845, 1.0
          %v1875 = vsub.f32 %v1847, 1.0
          %v1876 = vsub.f32 %v1849, 1.0
          %v1877 = vsub.f32 %v1851, 1.0
          %v1878 = vsub.f32 %v1853, 1.0
          %v1879 = vsub.f32 %v1855, 1.0
          %v1880 = vsub.f32 %v1857, 1.0
          %v1881 = vsub.f32 %v1859, 1.0
          %v1882 = vsub.f32 %v1861, 1.0
          %v1883 = vsub.f32 %v1863, 1.0
          %v1884 = vsub.f32 %v1865, 1.0
          %v1885 = vsub.f32 %v1867, 1.0
          %v1886 = vsub.f32 %v1869, 1.0
          %v1887 = vsub.f32 %v1871, 1.0
          %v1888 = vsel %vm1824, %v1808, %v1872
          %v1889 = vsel %vm1825, %v1809, %v1873
          %v1890 = vsel %vm1826, %v1810, %v1874
          %v1891 = vsel %vm1827, %v1811, %v1875
          %v1892 = vsel %vm1828, %v1812, %v1876
          %v1893 = vsel %vm1829, %v1813, %v1877
          %v1894 = vsel %vm1830, %v1814, %v1878
          %v1895 = vsel %vm1831, %v1815, %v1879
          %v1896 = vsel %vm1832, %v1816, %v1880
          %v1897 = vsel %vm1833, %v1817, %v1881
          %v1898 = vsel %vm1834, %v1818, %v1882
          %v1899 = vsel %vm1835, %v1819, %v1883
          %v1900 = vsel %vm1836, %v1820, %v1884
          %v1901 = vsel %vm1837, %v1821, %v1885
          %v1902 = vsel %vm1838, %v1822, %v1886
          %v1903 = vsel %vm1839, %v1823, %v1887
          %1904 = vst [vmem:[%s262] sm:$0xff] %v1888
          %1905 = vst [vmem:[%s262 + $0x8] sm:$0xff] %v1889
          %1906 = vst [vmem:[%s262 + $0x10] sm:$0xff] %v1890
          %1907 = vst [vmem:[%s262 + $0x18] sm:$0xff] %v1891
          %1908 = vst [vmem:[%s262 + $0x20] sm:$0xff] %v1892
          %1909 = vst [vmem:[%s262 + $0x28] sm:$0xff] %v1893
          %1910 = vst [vmem:[%s262 + $0x30] sm:$0xff] %v1894
          %1911 = vst [vmem:[%s262 + $0x38] sm:$0xff] %v1895
          %1912 = vst [vmem:[%s262 + $0x40] sm:$0xff] %v1896
          %1913 = vst [vmem:[%s262 + $0x48] sm:$0xff] %v1897
          %1914 = vst [vmem:[%s262 + $0x50] sm:$0xff] %v1898
          %1915 = vst [vmem:[%s262 + $0x58] sm:$0xff] %v1899
          %1916 = vst [vmem:[%s262 + $0x60] sm:$0xff] %v1900
          %1917 = vst [vmem:[%s262 + $0x68] sm:$0xff] %v1901
          %1918 = vst [vmem:[%s262 + $0x70] sm:$0xff] %v1902
          %1919 = vst [vmem:[%s262 + $0x78] sm:$0xff] %v1903
        $region44: #{tpu_custom_call.1} parent=35 // pred_fallthru
          _
        %s1920 = sand.u32 %s144, 1
        %s1921 = scalar_lea.sflag [#allocation6], %s1920
        %s1922 = sand.u32 %s144, 1
        %s1923 = smul.addr %s1922, 128
        %s1924 = scalar_lea.vmem [#allocation5], %s1923
        // Predicated region
        $region45: #{tpu_custom_call.1} parent=35 // pred_check
          %p1925 = pneg %p154
        $region46: #{tpu_custom_call.1} parent=35 // pred_check_branch
          %1927 = sbr.rel (%p1925) target = $region48
        $region47: #{tpu_custom_call.1} parent=35 // pred_region
          %s1928 = smul.u32 16, %s22
          %1930 = vsyncadd %s1921, 0
          %s1931 = smul.addr %s1928, 8
          %s1932 = scalar_lea.hbm %s4, %s1931
          %s1933 = sshll.u32 %s1924, 4
          %s1934 = int_to_ptr.vmem [resolvable:$true] %s1933
          %s1935 = sshll.u32 %s1932, 4
          %s1936 = int_to_ptr.hbm [resolvable:$true] %s1935
          %1941 = dma.vmem_to_hbm [thread:$0]  %s1934, 2048, %s1936, %s1921, 128, 128, 8
        $region48: #{tpu_custom_call.1} parent=35 // pred_fallthru
          _
      $region36: #{tpu_custom_call.1} parent=5 // pred_fallthru
        _
      %p1942 = scmp.le.s32.totalorder 2, %s13
      // Predicated region
      $region49: #{tpu_custom_call.1} parent=5 // pred_check
        %p1943 = pneg %p1942
      $region50: #{tpu_custom_call.1} parent=5 // pred_check_branch
        %1945 = sbr.rel (%p1943) target = $region52
      $region51: #{tpu_custom_call.1} parent=5 // pred_region
        %s1946 = ssub.s32 %s13, 2
        // Predicated region
        $region53: #{tpu_custom_call.1} parent=51 // pred_check
          %p1947 = pneg %p160
        $region54: #{tpu_custom_call.1} parent=51 // pred_check_branch
          %1949 = sbr.rel (%p1947) target = $region56
        $region55: #{tpu_custom_call.1} parent=51 // pred_region
          %s1950 = sand.u32 %s145, 1
          %s1951 = scalar_lea.sflag [#allocation6], %s1950
          %s1952 = sand.u32 %s145, 1
          %s1953 = smul.addr %s1952, 128
          %s1954 = scalar_lea.vmem [#allocation5], %s1953
          %1956 = dma.done %s1951, 2048
        $region56: #{tpu_custom_call.1} parent=51 // pred_fallthru
          _
      $region52: #{tpu_custom_call.1} parent=5 // pred_fallthru
        _
    $region6: #{tpu_custom_call.1} parent=1 // loop_footer
      %s17 = sadd.s32 1, %s13
    $region7: #{tpu_custom_call.1} parent=1 // loop_footer_branch
      %12 = sbr.rel target = $region3
    $region8: #{tpu_custom_call.1} parent=1 // loop_exit
      _
    %1957 = vsyncpa [#allocation6], 1
    %s1958 = scalar_lea.sflag [#allocation6], 1
    %1959 = vsyncpa %s1958, 1

</llo_original>
